<compile_context>
chip_gen: v7x
topology: tpu7x:2x2x1
jax: 0.10.0
libtpu: 0.0.40
codegen_flags: <defaults>
</compile_context>

<pallas_src>
import jax
import jax.numpy as jnp
from jax import lax
from jax.experimental import pallas as pl
from jax.experimental.pallas import tpu as pltpu


def ner_kernel(ids_ref, wpack_ref, out_ref):
    SBP = ids_ref.shape[0]
    R, H = wpack_ref.shape
    S, B, O = out_ref.shape
    BP = SBP // S
    Vp = R - 5 * H - 8                 # rows of the (padded) fused embedding block

    # ---- packed weight slices (all row offsets are multiples of 8) ----
    emb_proj = wpack_ref[0:Vp, :]                       # embedding @ wih0.T (padded)
    whh0 = wpack_ref[Vp:Vp + H, :]
    wih1 = wpack_ref[Vp + H:Vp + 2 * H, :]
    whh1 = wpack_ref[Vp + 2 * H:Vp + 3 * H, :]
    fc_h = wpack_ref[Vp + 3 * H:Vp + 4 * H, :]          # fc_w[:, :H].T, lane-padded to H
    fc_c = wpack_ref[Vp + 4 * H:Vp + 5 * H, :]          # fc_w[:, H:].T, lane-padded to H
    tail = wpack_ref[Vp + 5 * H:Vp + 5 * H + 8, :]      # aligned 8-row block
    bias0 = tail[0:1, :]               # bih0 + bhh0
    bias1 = tail[1:2, :]               # bih1 + bhh1
    w2v = tail[2:3, :]                 # w2_w.T @ v  (V folded into w2)
    fc_b = tail[3:4, :]                # fc bias, lane-padded to H

    # ---- embedding lookup fused with the ih0 projection (one MXU pass) ----
    ids = ids_ref[...]                                          # (S*BP, 1) int32
    lanes = lax.broadcasted_iota(jnp.int32, (SBP, Vp), 1)
    onehot = jnp.where(lanes == ids, 1.0, 0.0).astype(jnp.float32)
    ih0_all = jnp.dot(onehot, emb_proj,
                      preferred_element_type=jnp.float32) + bias0   # (S*BP, H)

    # ---- 2-layer Elman RNN (tanh), fully unrolled; state stays in vregs ----
    # TODO(synk): nn.RNN inter-layer dropout (p=0.5) applies only in training
    # mode; eval-mode (identity) semantics are implemented here.
    h0 = jnp.zeros((BP, H), jnp.float32)
    h1 = jnp.zeros((BP, H), jnp.float32)
    outs = []
    sv_cols = []
    for t in range(S):
        ih0_t = ih0_all[t * BP:(t + 1) * BP, :]          # sublane-aligned static slice
        rec1 = jnp.dot(h1, whh1, preferred_element_type=jnp.float32)  # uses h1_{t-1}
        h0 = jnp.tanh(ih0_t + jnp.dot(h0, whh0, preferred_element_type=jnp.float32))
        h1 = jnp.tanh(jnp.dot(h0, wih1, preferred_element_type=jnp.float32)
                      + rec1 + bias1)
        outs.append(h1)
        # per-step attention score contribution (V folded into w2): lane reduce
        sv_cols.append(jnp.sum(h1 * w2v, axis=-1, keepdims=True))   # (BP, 1)

    # ---- Bahdanau attention ----
    # Full score = v·tanh(w1 h1_final) + v_b + v·w2_b + out_t·(w2.T v); the
    # first three terms are constant over the S axis for a given row, so
    # softmax(score) == softmax(out_t·w2v) exactly -> the w1/V branch is dead.
    scores = jnp.concatenate(sv_cols, axis=1)                    # (BP, S)
    m = jnp.max(scores, axis=-1, keepdims=True)
    e = jnp.exp(scores - m)
    alpha = e * pl.reciprocal(jnp.sum(e, axis=-1, keepdims=True), approx=True)

    # context = bmm(alpha, outputs.permute(1,0,2)) as a VPU FMA chain over S
    context = jnp.zeros((BP, H), jnp.float32)
    for t in range(S):
        context = context + alpha[:, t:t + 1] * outs[t]

    # fc(cat([hidden[1], context], dim=1)) as two overlapped dots (no lane concat)
    logit = (jnp.dot(h1, fc_h, preferred_element_type=jnp.float32)
             + jnp.dot(context, fc_c, preferred_element_type=jnp.float32)
             + fc_b)                                             # (BP, H); lanes >= O are 0
    logit_bo = logit[:B, :O]

    # The PyTorch loop produces the identical logit at every time step.
    for t in range(S):
        out_ref[t, :, :] = logit_bo


def pack_params(params):
    """One-time packing of all weights into a single (R, H) f32 array.

    Call ONCE when parameters are loaded (not per forward pass) so none of the
    transposes/concats/folds land on the steady-state latency path.
    """
    f32 = jnp.float32
    V, _E = params['embedding'].shape
    H = params['whh0'].shape[0]
    O = params['fc_b'].shape[0]
    Vp = ((V + 7) // 8) * 8                               # sublane-aligned block

    # Fold embedding table into the layer-0 input projection.
    emb_proj = params['embedding'].astype(f32) @ params['wih0'].T.astype(f32)  # (V, H)
    emb_proj = jnp.pad(emb_proj, ((0, Vp - V), (0, 0)))
    # Fold the attention V projection into w2 (exact reassociation).
    w2v = (params['w2_w'].T @ params['v_w'][0]).reshape(1, H)
    # fc split into the h1 half and the context half, lane-padded to H (O <= H).
    fc_h = jnp.pad(params['fc_w'][:, :H].T, ((0, 0), (0, H - O)))
    fc_c = jnp.pad(params['fc_w'][:, H:].T, ((0, 0), (0, H - O)))
    fc_b = jnp.pad(params['fc_b'].reshape(1, O), ((0, 0), (0, H - O)))

    tail = jnp.concatenate([
        (params['bih0'] + params['bhh0']).reshape(1, H),
        (params['bih1'] + params['bhh1']).reshape(1, H),
        w2v,
        fc_b,
        jnp.zeros((4, H), f32),                           # pad tail block to 8 rows
    ], axis=0)

    w_pack = jnp.concatenate([
        emb_proj,                                         # rows [0, Vp)
        params['whh0'].T,                                 # rows [Vp, Vp+H)
        params['wih1'].T,                                 # rows [Vp+H, Vp+2H)
        params['whh1'].T,                                 # rows [Vp+2H, Vp+3H)
        fc_h,                                             # rows [Vp+3H, Vp+4H)
        fc_c,                                             # rows [Vp+4H, Vp+5H)
        tail,                                             # rows [Vp+5H, Vp+5H+8)
    ], axis=0).astype(f32)
    return {'w_pack': w_pack, 'output_dim': int(O)}


def rnn_bahdanau_ner_forward(text, packed):
    """text: (seq_len, batch) int32 token ids; packed: output of pack_params."""
    S, B = text.shape
    w_pack = packed['w_pack']
    O = packed['output_dim']
    BP = ((B + 7) // 8) * 8            # sublane-aligned per-step batch block

    ids = text.astype(jnp.int32)
    if BP != B:
        # Padded rows use id 0; their results are computed then discarded.
        ids = jnp.pad(ids, ((0, 0), (0, BP - B)))
    ids = ids.reshape(S * BP, 1)

    # Exactly 2 input DMAs (ids + packed weights); no grid, everything resident.
    return pl.pallas_call(
        ner_kernel,
        out_shape=jax.ShapeDtypeStruct((S, B, O), jnp.float32),
        in_specs=[
            pl.BlockSpec(memory_space=pltpu.MemorySpace.VMEM),   # ids
            pl.BlockSpec(memory_space=pltpu.MemorySpace.VMEM),   # packed weights
        ],
        out_specs=pl.BlockSpec(memory_space=pltpu.MemorySpace.VMEM),
    )(ids, w_pack)


def reference_forward(text, params):
    """Pure-JAX reference mirroring the PyTorch module (eval mode)."""
    emb = jnp.take(params['embedding'], text, axis=0)
    S, B, _ = emb.shape
    H = params['whh0'].shape[0]
    h0 = jnp.zeros((B, H), jnp.float32)
    h1 = jnp.zeros((B, H), jnp.float32)
    outs = []
    for t in range(S):
        x = emb[t]
        h0 = jnp.tanh(x @ params['wih0'].T + params['bih0']
                      + h0 @ params['whh0'].T + params['bhh0'])
        h1 = jnp.tanh(h0 @ params['wih1'].T + params['bih1']
                      + h1 @ params['whh1'].T + params['bhh1'])
        outs.append(h1)
    outs = jnp.stack(outs, axis=0)                                   # (S, B, H)
    w1h = jnp.tanh(h1 @ params['w1_w'].T + params['w1_b'])
    w2o = outs @ params['w2_w'].T + params['w2_b']
    scores = ((w1h[None] + w2o) @ params['v_w'].T + params['v_b'])[:, :, 0].T  # (B, S)
    alpha = jax.nn.softmax(scores, axis=-1)
    ctx = jnp.einsum('bs,sbh->bh', alpha, outs)
    logit = jnp.concatenate([h1, ctx], axis=1) @ params['fc_w'].T + params['fc_b']
    return jnp.broadcast_to(logit[None], (S, B, params['fc_b'].shape[0]))


def init_params(key, input_dim, embedding_dim, hidden_dim, output_dim):
    keys = jax.random.split(key, 16)
    s = 0.1
    return {
        'embedding': jax.random.normal(keys[0], (input_dim, embedding_dim), jnp.float32),
        'wih0': s * jax.random.normal(keys[1], (hidden_dim, embedding_dim), jnp.float32),
        'whh0': s * jax.random.normal(keys[2], (hidden_dim, hidden_dim), jnp.float32),
        'bih0': s * jax.random.normal(keys[3], (hidden_dim,), jnp.float32),
        'bhh0': s * jax.random.normal(keys[4], (hidden_dim,), jnp.float32),
        'wih1': s * jax.random.normal(keys[5], (hidden_dim, hidden_dim), jnp.float32),
        'whh1': s * jax.random.normal(keys[6], (hidden_dim, hidden_dim), jnp.float32),
        'bih1': s * jax.random.normal(keys[7], (hidden_dim,), jnp.float32),
        'bhh1': s * jax.random.normal(keys[8], (hidden_dim,), jnp.float32),
        'w1_w': s * jax.random.normal(keys[9], (hidden_dim, hidden_dim), jnp.float32),
        'w1_b': s * jax.random.normal(keys[10], (hidden_dim,), jnp.float32),
        'w2_w': s * jax.random.normal(keys[11], (hidden_dim, hidden_dim), jnp.float32),
        'w2_b': s * jax.random.normal(keys[12], (hidden_dim,), jnp.float32),
        'v_w': s * jax.random.normal(keys[13], (1, hidden_dim), jnp.float32),
        'v_b': s * jax.random.normal(keys[14], (1,), jnp.float32),
        'fc_w': s * jax.random.normal(keys[15], (output_dim, 2 * hidden_dim), jnp.float32),
        'fc_b': jnp.zeros((output_dim,), jnp.float32),
    }


if __name__ == "__main__":
    input_dim, embedding_dim, hidden_dim, output_dim = 50, 32, 32, 8
    seq_len, batch = 8, 4

    key = jax.random.PRNGKey(0)
    k_param, k_text = jax.random.split(key)
    params = init_params(k_param, input_dim, embedding_dim, hidden_dim, output_dim)
    text = jax.random.randint(k_text, (seq_len, batch), 0, input_dim, dtype=jnp.int32)

    # One-time packing (hoisted out of the per-call path).
    packed = pack_params(params)

    logits = rnn_bahdanau_ner_forward(text, packed)
    logits = jax.block_until_ready(logits)

    ref = reference_forward(text, params)
    assert logits.shape == (seq_len, batch, output_dim)
    assert jnp.allclose(logits, ref, rtol=1e-2, atol=1e-2), "mismatch vs JAX reference"

    print("KERNEL_OK")
</pallas_src>

<mosaic_0001>
module attributes {stable_mosaic.version = 11 : i64} {
  func.func @ner_kernel(%arg0: memref<64x1xi32, #tpu.memory_space<vmem>>, %arg1: memref<224x32xf32, #tpu.memory_space<vmem>>, %arg2: memref<8x4x8xf32, #tpu.memory_space<vmem>>) attributes {dimension_semantics = [], scalar_prefetch = 0 : i64, scratch_operands = 0 : i64, tpu.core_type = #tpu.core_type<tc>} {
    %c0 = arith.constant 0 : index
    %c0_0 = arith.constant 0 : index
    %0 = vector.load %arg1[%c0, %c0_0] : memref<224x32xf32, #tpu.memory_space<vmem>>, vector<56x32xf32>
    %c56 = arith.constant 56 : index
    %c0_1 = arith.constant 0 : index
    %1 = vector.load %arg1[%c56, %c0_1] : memref<224x32xf32, #tpu.memory_space<vmem>>, vector<32x32xf32>
    %c88 = arith.constant 88 : index
    %c0_2 = arith.constant 0 : index
    %2 = vector.load %arg1[%c88, %c0_2] : memref<224x32xf32, #tpu.memory_space<vmem>>, vector<32x32xf32>
    %c120 = arith.constant 120 : index
    %c0_3 = arith.constant 0 : index
    %3 = vector.load %arg1[%c120, %c0_3] : memref<224x32xf32, #tpu.memory_space<vmem>>, vector<32x32xf32>
    %c152 = arith.constant 152 : index
    %c0_4 = arith.constant 0 : index
    %4 = vector.load %arg1[%c152, %c0_4] : memref<224x32xf32, #tpu.memory_space<vmem>>, vector<32x32xf32>
    %c184 = arith.constant 184 : index
    %c0_5 = arith.constant 0 : index
    %5 = vector.load %arg1[%c184, %c0_5] : memref<224x32xf32, #tpu.memory_space<vmem>>, vector<32x32xf32>
    %c216 = arith.constant 216 : index
    %c0_6 = arith.constant 0 : index
    %6 = vector.load %arg1[%c216, %c0_6] : memref<224x32xf32, #tpu.memory_space<vmem>>, vector<8x32xf32>
    %7 = vector.extract_strided_slice %6 {offsets = [0, 0], sizes = [1, 32], strides = [1, 1]} : vector<8x32xf32> to vector<1x32xf32>
    %8 = vector.extract_strided_slice %6 {offsets = [1, 0], sizes = [1, 32], strides = [1, 1]} : vector<8x32xf32> to vector<1x32xf32>
    %9 = vector.extract_strided_slice %6 {offsets = [2, 0], sizes = [1, 32], strides = [1, 1]} : vector<8x32xf32> to vector<1x32xf32>
    %10 = vector.extract_strided_slice %6 {offsets = [3, 0], sizes = [1, 32], strides = [1, 1]} : vector<8x32xf32> to vector<1x32xf32>
    %c0_7 = arith.constant 0 : index
    %c0_8 = arith.constant 0 : index
    %11 = vector.load %arg0[%c0_7, %c0_8] : memref<64x1xi32, #tpu.memory_space<vmem>>, vector<64x1xi32>
    %12 = tpu.iota {dimensions = array<i32: 1>} : vector<64x56xi32>
    %13 = vector.broadcast %11 : vector<64x1xi32> to vector<64x56xi32>
    %14 = arith.cmpi eq, %12, %13 : vector<64x56xi32>
    %cst = arith.constant 1.000000e+00 : f32
    %cst_9 = arith.constant 0.000000e+00 : f32
    %15 = vector.broadcast %cst : f32 to vector<64x56xf32>
    %16 = vector.broadcast %cst_9 : f32 to vector<64x56xf32>
    %17 = arith.select %14, %15, %16 : vector<64x56xi1>, vector<64x56xf32>
    %cst_10 = arith.constant dense<0.000000e+00> : vector<64x32xf32>
    %18 = tpu.matmul %17, %0, %cst_10 {dimension_numbers = #tpu.dot_dimension_numbers<[1], [0], [0], [1], [0, 0, 1, 1], [], []>} : vector<64x56xf32>, vector<56x32xf32>, vector<64x32xf32> -> vector<64x32xf32>
    %19 = vector.broadcast %7 : vector<1x32xf32> to vector<64x32xf32>
    %20 = arith.addf %18, %19 : vector<64x32xf32>
    %cst_11 = arith.constant 0.000000e+00 : f32
    %21 = vector.broadcast %cst_11 : f32 to vector<8x32xf32>
    %cst_12 = arith.constant 0.000000e+00 : f32
    %22 = vector.broadcast %cst_12 : f32 to vector<8x32xf32>
    %23 = vector.extract_strided_slice %20 {offsets = [0, 0], sizes = [8, 32], strides = [1, 1]} : vector<64x32xf32> to vector<8x32xf32>
    %cst_13 = arith.constant dense<0.000000e+00> : vector<8x32xf32>
    %24 = tpu.matmul %22, %3, %cst_13 {dimension_numbers = #tpu.dot_dimension_numbers<[1], [0], [0], [1], [0, 0, 1, 1], [], []>} : vector<8x32xf32>, vector<32x32xf32>, vector<8x32xf32> -> vector<8x32xf32>
    %cst_14 = arith.constant dense<0.000000e+00> : vector<8x32xf32>
    %25 = tpu.matmul %21, %1, %cst_14 {dimension_numbers = #tpu.dot_dimension_numbers<[1], [0], [0], [1], [0, 0, 1, 1], [], []>} : vector<8x32xf32>, vector<32x32xf32>, vector<8x32xf32> -> vector<8x32xf32>
    %26 = arith.addf %23, %25 : vector<8x32xf32>
    %27 = math.tanh %26 : vector<8x32xf32>
    %cst_15 = arith.constant dense<0.000000e+00> : vector<8x32xf32>
    %28 = tpu.matmul %27, %2, %cst_15 {dimension_numbers = #tpu.dot_dimension_numbers<[1], [0], [0], [1], [0, 0, 1, 1], [], []>} : vector<8x32xf32>, vector<32x32xf32>, vector<8x32xf32> -> vector<8x32xf32>
    %29 = arith.addf %28, %24 : vector<8x32xf32>
    %30 = vector.broadcast %8 : vector<1x32xf32> to vector<8x32xf32>
    %31 = arith.addf %29, %30 : vector<8x32xf32>
    %32 = math.tanh %31 : vector<8x32xf32>
    %33 = vector.broadcast %9 : vector<1x32xf32> to vector<8x32xf32>
    %34 = arith.mulf %32, %33 : vector<8x32xf32>
    %cst_16 = arith.constant dense<0.000000e+00> : vector<8xf32>
    %35 = vector.multi_reduction <add>, %34, %cst_16 [1] : vector<8x32xf32> to vector<8xf32>
    %36 = vector.shape_cast %35 : vector<8xf32> to vector<8x1xf32>
    %37 = vector.extract_strided_slice %20 {offsets = [8, 0], sizes = [8, 32], strides = [1, 1]} : vector<64x32xf32> to vector<8x32xf32>
    %cst_17 = arith.constant dense<0.000000e+00> : vector<8x32xf32>
    %38 = tpu.matmul %32, %3, %cst_17 {dimension_numbers = #tpu.dot_dimension_numbers<[1], [0], [0], [1], [0, 0, 1, 1], [], []>} : vector<8x32xf32>, vector<32x32xf32>, vector<8x32xf32> -> vector<8x32xf32>
    %cst_18 = arith.constant dense<0.000000e+00> : vector<8x32xf32>
    %39 = tpu.matmul %27, %1, %cst_18 {dimension_numbers = #tpu.dot_dimension_numbers<[1], [0], [0], [1], [0, 0, 1, 1], [], []>} : vector<8x32xf32>, vector<32x32xf32>, vector<8x32xf32> -> vector<8x32xf32>
    %40 = arith.addf %37, %39 : vector<8x32xf32>
    %41 = math.tanh %40 : vector<8x32xf32>
    %cst_19 = arith.constant dense<0.000000e+00> : vector<8x32xf32>
    %42 = tpu.matmul %41, %2, %cst_19 {dimension_numbers = #tpu.dot_dimension_numbers<[1], [0], [0], [1], [0, 0, 1, 1], [], []>} : vector<8x32xf32>, vector<32x32xf32>, vector<8x32xf32> -> vector<8x32xf32>
    %43 = arith.addf %42, %38 : vector<8x32xf32>
    %44 = vector.broadcast %8 : vector<1x32xf32> to vector<8x32xf32>
    %45 = arith.addf %43, %44 : vector<8x32xf32>
    %46 = math.tanh %45 : vector<8x32xf32>
    %47 = vector.broadcast %9 : vector<1x32xf32> to vector<8x32xf32>
    %48 = arith.mulf %46, %47 : vector<8x32xf32>
    %cst_20 = arith.constant dense<0.000000e+00> : vector<8xf32>
    %49 = vector.multi_reduction <add>, %48, %cst_20 [1] : vector<8x32xf32> to vector<8xf32>
    %50 = vector.shape_cast %49 : vector<8xf32> to vector<8x1xf32>
    %51 = vector.extract_strided_slice %20 {offsets = [16, 0], sizes = [8, 32], strides = [1, 1]} : vector<64x32xf32> to vector<8x32xf32>
    %cst_21 = arith.constant dense<0.000000e+00> : vector<8x32xf32>
    %52 = tpu.matmul %46, %3, %cst_21 {dimension_numbers = #tpu.dot_dimension_numbers<[1], [0], [0], [1], [0, 0, 1, 1], [], []>} : vector<8x32xf32>, vector<32x32xf32>, vector<8x32xf32> -> vector<8x32xf32>
    %cst_22 = arith.constant dense<0.000000e+00> : vector<8x32xf32>
    %53 = tpu.matmul %41, %1, %cst_22 {dimension_numbers = #tpu.dot_dimension_numbers<[1], [0], [0], [1], [0, 0, 1, 1], [], []>} : vector<8x32xf32>, vector<32x32xf32>, vector<8x32xf32> -> vector<8x32xf32>
    %54 = arith.addf %51, %53 : vector<8x32xf32>
    %55 = math.tanh %54 : vector<8x32xf32>
    %cst_23 = arith.constant dense<0.000000e+00> : vector<8x32xf32>
    %56 = tpu.matmul %55, %2, %cst_23 {dimension_numbers = #tpu.dot_dimension_numbers<[1], [0], [0], [1], [0, 0, 1, 1], [], []>} : vector<8x32xf32>, vector<32x32xf32>, vector<8x32xf32> -> vector<8x32xf32>
    %57 = arith.addf %56, %52 : vector<8x32xf32>
    %58 = vector.broadcast %8 : vector<1x32xf32> to vector<8x32xf32>
    %59 = arith.addf %57, %58 : vector<8x32xf32>
    %60 = math.tanh %59 : vector<8x32xf32>
    %61 = vector.broadcast %9 : vector<1x32xf32> to vector<8x32xf32>
    %62 = arith.mulf %60, %61 : vector<8x32xf32>
    %cst_24 = arith.constant dense<0.000000e+00> : vector<8xf32>
    %63 = vector.multi_reduction <add>, %62, %cst_24 [1] : vector<8x32xf32> to vector<8xf32>
    %64 = vector.shape_cast %63 : vector<8xf32> to vector<8x1xf32>
    %65 = vector.extract_strided_slice %20 {offsets = [24, 0], sizes = [8, 32], strides = [1, 1]} : vector<64x32xf32> to vector<8x32xf32>
    %cst_25 = arith.constant dense<0.000000e+00> : vector<8x32xf32>
    %66 = tpu.matmul %60, %3, %cst_25 {dimension_numbers = #tpu.dot_dimension_numbers<[1], [0], [0], [1], [0, 0, 1, 1], [], []>} : vector<8x32xf32>, vector<32x32xf32>, vector<8x32xf32> -> vector<8x32xf32>
    %cst_26 = arith.constant dense<0.000000e+00> : vector<8x32xf32>
    %67 = tpu.matmul %55, %1, %cst_26 {dimension_numbers = #tpu.dot_dimension_numbers<[1], [0], [0], [1], [0, 0, 1, 1], [], []>} : vector<8x32xf32>, vector<32x32xf32>, vector<8x32xf32> -> vector<8x32xf32>
    %68 = arith.addf %65, %67 : vector<8x32xf32>
    %69 = math.tanh %68 : vector<8x32xf32>
    %cst_27 = arith.constant dense<0.000000e+00> : vector<8x32xf32>
    %70 = tpu.matmul %69, %2, %cst_27 {dimension_numbers = #tpu.dot_dimension_numbers<[1], [0], [0], [1], [0, 0, 1, 1], [], []>} : vector<8x32xf32>, vector<32x32xf32>, vector<8x32xf32> -> vector<8x32xf32>
    %71 = arith.addf %70, %66 : vector<8x32xf32>
    %72 = vector.broadcast %8 : vector<1x32xf32> to vector<8x32xf32>
    %73 = arith.addf %71, %72 : vector<8x32xf32>
    %74 = math.tanh %73 : vector<8x32xf32>
    %75 = vector.broadcast %9 : vector<1x32xf32> to vector<8x32xf32>
    %76 = arith.mulf %74, %75 : vector<8x32xf32>
    %cst_28 = arith.constant dense<0.000000e+00> : vector<8xf32>
    %77 = vector.multi_reduction <add>, %76, %cst_28 [1] : vector<8x32xf32> to vector<8xf32>
    %78 = vector.shape_cast %77 : vector<8xf32> to vector<8x1xf32>
    %79 = vector.extract_strided_slice %20 {offsets = [32, 0], sizes = [8, 32], strides = [1, 1]} : vector<64x32xf32> to vector<8x32xf32>
    %cst_29 = arith.constant dense<0.000000e+00> : vector<8x32xf32>
    %80 = tpu.matmul %74, %3, %cst_29 {dimension_numbers = #tpu.dot_dimension_numbers<[1], [0], [0], [1], [0, 0, 1, 1], [], []>} : vector<8x32xf32>, vector<32x32xf32>, vector<8x32xf32> -> vector<8x32xf32>
    %cst_30 = arith.constant dense<0.000000e+00> : vector<8x32xf32>
    %81 = tpu.matmul %69, %1, %cst_30 {dimension_numbers = #tpu.dot_dimension_numbers<[1], [0], [0], [1], [0, 0, 1, 1], [], []>} : vector<8x32xf32>, vector<32x32xf32>, vector<8x32xf32> -> vector<8x32xf32>
    %82 = arith.addf %79, %81 : vector<8x32xf32>
    %83 = math.tanh %82 : vector<8x32xf32>
    %cst_31 = arith.constant dense<0.000000e+00> : vector<8x32xf32>
    %84 = tpu.matmul %83, %2, %cst_31 {dimension_numbers = #tpu.dot_dimension_numbers<[1], [0], [0], [1], [0, 0, 1, 1], [], []>} : vector<8x32xf32>, vector<32x32xf32>, vector<8x32xf32> -> vector<8x32xf32>
    %85 = arith.addf %84, %80 : vector<8x32xf32>
    %86 = vector.broadcast %8 : vector<1x32xf32> to vector<8x32xf32>
    %87 = arith.addf %85, %86 : vector<8x32xf32>
    %88 = math.tanh %87 : vector<8x32xf32>
    %89 = vector.broadcast %9 : vector<1x32xf32> to vector<8x32xf32>
    %90 = arith.mulf %88, %89 : vector<8x32xf32>
    %cst_32 = arith.constant dense<0.000000e+00> : vector<8xf32>
    %91 = vector.multi_reduction <add>, %90, %cst_32 [1] : vector<8x32xf32> to vector<8xf32>
    %92 = vector.shape_cast %91 : vector<8xf32> to vector<8x1xf32>
    %93 = vector.extract_strided_slice %20 {offsets = [40, 0], sizes = [8, 32], strides = [1, 1]} : vector<64x32xf32> to vector<8x32xf32>
    %cst_33 = arith.constant dense<0.000000e+00> : vector<8x32xf32>
    %94 = tpu.matmul %88, %3, %cst_33 {dimension_numbers = #tpu.dot_dimension_numbers<[1], [0], [0], [1], [0, 0, 1, 1], [], []>} : vector<8x32xf32>, vector<32x32xf32>, vector<8x32xf32> -> vector<8x32xf32>
    %cst_34 = arith.constant dense<0.000000e+00> : vector<8x32xf32>
    %95 = tpu.matmul %83, %1, %cst_34 {dimension_numbers = #tpu.dot_dimension_numbers<[1], [0], [0], [1], [0, 0, 1, 1], [], []>} : vector<8x32xf32>, vector<32x32xf32>, vector<8x32xf32> -> vector<8x32xf32>
    %96 = arith.addf %93, %95 : vector<8x32xf32>
    %97 = math.tanh %96 : vector<8x32xf32>
    %cst_35 = arith.constant dense<0.000000e+00> : vector<8x32xf32>
    %98 = tpu.matmul %97, %2, %cst_35 {dimension_numbers = #tpu.dot_dimension_numbers<[1], [0], [0], [1], [0, 0, 1, 1], [], []>} : vector<8x32xf32>, vector<32x32xf32>, vector<8x32xf32> -> vector<8x32xf32>
    %99 = arith.addf %98, %94 : vector<8x32xf32>
    %100 = vector.broadcast %8 : vector<1x32xf32> to vector<8x32xf32>
    %101 = arith.addf %99, %100 : vector<8x32xf32>
    %102 = math.tanh %101 : vector<8x32xf32>
    %103 = vector.broadcast %9 : vector<1x32xf32> to vector<8x32xf32>
    %104 = arith.mulf %102, %103 : vector<8x32xf32>
    %cst_36 = arith.constant dense<0.000000e+00> : vector<8xf32>
    %105 = vector.multi_reduction <add>, %104, %cst_36 [1] : vector<8x32xf32> to vector<8xf32>
    %106 = vector.shape_cast %105 : vector<8xf32> to vector<8x1xf32>
    %107 = vector.extract_strided_slice %20 {offsets = [48, 0], sizes = [8, 32], strides = [1, 1]} : vector<64x32xf32> to vector<8x32xf32>
    %cst_37 = arith.constant dense<0.000000e+00> : vector<8x32xf32>
    %108 = tpu.matmul %102, %3, %cst_37 {dimension_numbers = #tpu.dot_dimension_numbers<[1], [0], [0], [1], [0, 0, 1, 1], [], []>} : vector<8x32xf32>, vector<32x32xf32>, vector<8x32xf32> -> vector<8x32xf32>
    %cst_38 = arith.constant dense<0.000000e+00> : vector<8x32xf32>
    %109 = tpu.matmul %97, %1, %cst_38 {dimension_numbers = #tpu.dot_dimension_numbers<[1], [0], [0], [1], [0, 0, 1, 1], [], []>} : vector<8x32xf32>, vector<32x32xf32>, vector<8x32xf32> -> vector<8x32xf32>
    %110 = arith.addf %107, %109 : vector<8x32xf32>
    %111 = math.tanh %110 : vector<8x32xf32>
    %cst_39 = arith.constant dense<0.000000e+00> : vector<8x32xf32>
    %112 = tpu.matmul %111, %2, %cst_39 {dimension_numbers = #tpu.dot_dimension_numbers<[1], [0], [0], [1], [0, 0, 1, 1], [], []>} : vector<8x32xf32>, vector<32x32xf32>, vector<8x32xf32> -> vector<8x32xf32>
    %113 = arith.addf %112, %108 : vector<8x32xf32>
    %114 = vector.broadcast %8 : vector<1x32xf32> to vector<8x32xf32>
    %115 = arith.addf %113, %114 : vector<8x32xf32>
    %116 = math.tanh %115 : vector<8x32xf32>
    %117 = vector.broadcast %9 : vector<1x32xf32> to vector<8x32xf32>
    %118 = arith.mulf %116, %117 : vector<8x32xf32>
    %cst_40 = arith.constant dense<0.000000e+00> : vector<8xf32>
    %119 = vector.multi_reduction <add>, %118, %cst_40 [1] : vector<8x32xf32> to vector<8xf32>
    %120 = vector.shape_cast %119 : vector<8xf32> to vector<8x1xf32>
    %121 = vector.extract_strided_slice %20 {offsets = [56, 0], sizes = [8, 32], strides = [1, 1]} : vector<64x32xf32> to vector<8x32xf32>
    %cst_41 = arith.constant dense<0.000000e+00> : vector<8x32xf32>
    %122 = tpu.matmul %116, %3, %cst_41 {dimension_numbers = #tpu.dot_dimension_numbers<[1], [0], [0], [1], [0, 0, 1, 1], [], []>} : vector<8x32xf32>, vector<32x32xf32>, vector<8x32xf32> -> vector<8x32xf32>
    %cst_42 = arith.constant dense<0.000000e+00> : vector<8x32xf32>
    %123 = tpu.matmul %111, %1, %cst_42 {dimension_numbers = #tpu.dot_dimension_numbers<[1], [0], [0], [1], [0, 0, 1, 1], [], []>} : vector<8x32xf32>, vector<32x32xf32>, vector<8x32xf32> -> vector<8x32xf32>
    %124 = arith.addf %121, %123 : vector<8x32xf32>
    %125 = math.tanh %124 : vector<8x32xf32>
    %cst_43 = arith.constant dense<0.000000e+00> : vector<8x32xf32>
    %126 = tpu.matmul %125, %2, %cst_43 {dimension_numbers = #tpu.dot_dimension_numbers<[1], [0], [0], [1], [0, 0, 1, 1], [], []>} : vector<8x32xf32>, vector<32x32xf32>, vector<8x32xf32> -> vector<8x32xf32>
    %127 = arith.addf %126, %122 : vector<8x32xf32>
    %128 = vector.broadcast %8 : vector<1x32xf32> to vector<8x32xf32>
    %129 = arith.addf %127, %128 : vector<8x32xf32>
    %130 = math.tanh %129 : vector<8x32xf32>
    %131 = vector.broadcast %9 : vector<1x32xf32> to vector<8x32xf32>
    %132 = arith.mulf %130, %131 : vector<8x32xf32>
    %cst_44 = arith.constant dense<0.000000e+00> : vector<8xf32>
    %133 = vector.multi_reduction <add>, %132, %cst_44 [1] : vector<8x32xf32> to vector<8xf32>
    %134 = vector.shape_cast %133 : vector<8xf32> to vector<8x1xf32>
    %135 = tpu.concatenate %36, %50, %64, %78, %92, %106, %120, %134 in 1 : vector<8x1xf32>, vector<8x1xf32>, vector<8x1xf32>, vector<8x1xf32>, vector<8x1xf32>, vector<8x1xf32>, vector<8x1xf32>, vector<8x1xf32> -> vector<8x8xf32>
    %cst_45 = arith.constant dense<0xFF800000> : vector<8xf32>
    %136 = vector.multi_reduction <maximumf>, %135, %cst_45 [1] : vector<8x8xf32> to vector<8xf32>
    %137 = vector.shape_cast %136 : vector<8xf32> to vector<8x1xf32>
    %138 = vector.broadcast %137 : vector<8x1xf32> to vector<8x8xf32>
    %139 = arith.subf %135, %138 : vector<8x8xf32>
    %140 = math.exp %139 : vector<8x8xf32>
    %cst_46 = arith.constant dense<0.000000e+00> : vector<8xf32>
    %141 = vector.multi_reduction <add>, %140, %cst_46 [1] : vector<8x8xf32> to vector<8xf32>
    %142 = vector.shape_cast %141 : vector<8xf32> to vector<8x1xf32>
    %143 = tpu.reciprocal %142 {approx = true} : vector<8x1xf32> -> vector<8x1xf32>
    %144 = vector.broadcast %143 : vector<8x1xf32> to vector<8x8xf32>
    %145 = arith.mulf %140, %144 : vector<8x8xf32>
    %cst_47 = arith.constant 0.000000e+00 : f32
    %146 = vector.broadcast %cst_47 : f32 to vector<8x32xf32>
    %147 = vector.extract_strided_slice %145 {offsets = [0, 0], sizes = [8, 1], strides = [1, 1]} : vector<8x8xf32> to vector<8x1xf32>
    %148 = vector.broadcast %147 : vector<8x1xf32> to vector<8x32xf32>
    %149 = arith.mulf %148, %32 : vector<8x32xf32>
    %150 = arith.addf %146, %149 : vector<8x32xf32>
    %151 = vector.extract_strided_slice %145 {offsets = [0, 1], sizes = [8, 1], strides = [1, 1]} : vector<8x8xf32> to vector<8x1xf32>
    %152 = vector.broadcast %151 : vector<8x1xf32> to vector<8x32xf32>
    %153 = arith.mulf %152, %46 : vector<8x32xf32>
    %154 = arith.addf %150, %153 : vector<8x32xf32>
    %155 = vector.extract_strided_slice %145 {offsets = [0, 2], sizes = [8, 1], strides = [1, 1]} : vector<8x8xf32> to vector<8x1xf32>
    %156 = vector.broadcast %155 : vector<8x1xf32> to vector<8x32xf32>
    %157 = arith.mulf %156, %60 : vector<8x32xf32>
    %158 = arith.addf %154, %157 : vector<8x32xf32>
    %159 = vector.extract_strided_slice %145 {offsets = [0, 3], sizes = [8, 1], strides = [1, 1]} : vector<8x8xf32> to vector<8x1xf32>
    %160 = vector.broadcast %159 : vector<8x1xf32> to vector<8x32xf32>
    %161 = arith.mulf %160, %74 : vector<8x32xf32>
    %162 = arith.addf %158, %161 : vector<8x32xf32>
    %163 = vector.extract_strided_slice %145 {offsets = [0, 4], sizes = [8, 1], strides = [1, 1]} : vector<8x8xf32> to vector<8x1xf32>
    %164 = vector.broadcast %163 : vector<8x1xf32> to vector<8x32xf32>
    %165 = arith.mulf %164, %88 : vector<8x32xf32>
    %166 = arith.addf %162, %165 : vector<8x32xf32>
    %167 = vector.extract_strided_slice %145 {offsets = [0, 5], sizes = [8, 1], strides = [1, 1]} : vector<8x8xf32> to vector<8x1xf32>
    %168 = vector.broadcast %167 : vector<8x1xf32> to vector<8x32xf32>
    %169 = arith.mulf %168, %102 : vector<8x32xf32>
    %170 = arith.addf %166, %169 : vector<8x32xf32>
    %171 = vector.extract_strided_slice %145 {offsets = [0, 6], sizes = [8, 1], strides = [1, 1]} : vector<8x8xf32> to vector<8x1xf32>
    %172 = vector.broadcast %171 : vector<8x1xf32> to vector<8x32xf32>
    %173 = arith.mulf %172, %116 : vector<8x32xf32>
    %174 = arith.addf %170, %173 : vector<8x32xf32>
    %175 = vector.extract_strided_slice %145 {offsets = [0, 7], sizes = [8, 1], strides = [1, 1]} : vector<8x8xf32> to vector<8x1xf32>
    %176 = vector.broadcast %175 : vector<8x1xf32> to vector<8x32xf32>
    %177 = arith.mulf %176, %130 : vector<8x32xf32>
    %178 = arith.addf %174, %177 : vector<8x32xf32>
    %cst_48 = arith.constant dense<0.000000e+00> : vector<8x32xf32>
    %179 = tpu.matmul %130, %4, %cst_48 {dimension_numbers = #tpu.dot_dimension_numbers<[1], [0], [0], [1], [0, 0, 1, 1], [], []>} : vector<8x32xf32>, vector<32x32xf32>, vector<8x32xf32> -> vector<8x32xf32>
    %cst_49 = arith.constant dense<0.000000e+00> : vector<8x32xf32>
    %180 = tpu.matmul %178, %5, %cst_49 {dimension_numbers = #tpu.dot_dimension_numbers<[1], [0], [0], [1], [0, 0, 1, 1], [], []>} : vector<8x32xf32>, vector<32x32xf32>, vector<8x32xf32> -> vector<8x32xf32>
    %181 = arith.addf %179, %180 : vector<8x32xf32>
    %182 = vector.broadcast %10 : vector<1x32xf32> to vector<8x32xf32>
    %183 = arith.addf %181, %182 : vector<8x32xf32>
    %184 = vector.extract_strided_slice %183 {offsets = [0, 0], sizes = [4, 8], strides = [1, 1]} : vector<8x32xf32> to vector<4x8xf32>
    %c0_50 = arith.constant 0 : index
    %c0_51 = arith.constant 0 : index
    %c0_52 = arith.constant 0 : index
    %185 = vector.load %arg2[%c0_50, %c0_51, %c0_52] : memref<8x4x8xf32, #tpu.memory_space<vmem>>, vector<1x4x8xf32>
    %186 = vector.shape_cast %185 : vector<1x4x8xf32> to vector<4x8xf32>
    %187 = vector.shape_cast %184 : vector<4x8xf32> to vector<1x4x8xf32>
    tpu.vector_store %arg2[%c0_50, %c0_51, %c0_52], %187 {strides = array<i32>} : memref<8x4x8xf32, #tpu.memory_space<vmem>>, vector<1x4x8xf32>,
    %c1 = arith.constant 1 : index
    %c0_53 = arith.constant 0 : index
    %c0_54 = arith.constant 0 : index
    %188 = vector.load %arg2[%c1, %c0_53, %c0_54] : memref<8x4x8xf32, #tpu.memory_space<vmem>>, vector<1x4x8xf32>
    %189 = vector.shape_cast %188 : vector<1x4x8xf32> to vector<4x8xf32>
    %190 = vector.shape_cast %184 : vector<4x8xf32> to vector<1x4x8xf32>
    tpu.vector_store %arg2[%c1, %c0_53, %c0_54], %190 {strides = array<i32>} : memref<8x4x8xf32, #tpu.memory_space<vmem>>, vector<1x4x8xf32>,
    %c2 = arith.constant 2 : index
    %c0_55 = arith.constant 0 : index
    %c0_56 = arith.constant 0 : index
    %191 = vector.load %arg2[%c2, %c0_55, %c0_56] : memref<8x4x8xf32, #tpu.memory_space<vmem>>, vector<1x4x8xf32>
    %192 = vector.shape_cast %191 : vector<1x4x8xf32> to vector<4x8xf32>
    %193 = vector.shape_cast %184 : vector<4x8xf32> to vector<1x4x8xf32>
    tpu.vector_store %arg2[%c2, %c0_55, %c0_56], %193 {strides = array<i32>} : memref<8x4x8xf32, #tpu.memory_space<vmem>>, vector<1x4x8xf32>,
    %c3 = arith.constant 3 : index
    %c0_57 = arith.constant 0 : index
    %c0_58 = arith.constant 0 : index
    %194 = vector.load %arg2[%c3, %c0_57, %c0_58] : memref<8x4x8xf32, #tpu.memory_space<vmem>>, vector<1x4x8xf32>
    %195 = vector.shape_cast %194 : vector<1x4x8xf32> to vector<4x8xf32>
    %196 = vector.shape_cast %184 : vector<4x8xf32> to vector<1x4x8xf32>
    tpu.vector_store %arg2[%c3, %c0_57, %c0_58], %196 {strides = array<i32>} : memref<8x4x8xf32, #tpu.memory_space<vmem>>, vector<1x4x8xf32>,
    %c4 = arith.constant 4 : index
    %c0_59 = arith.constant 0 : index
    %c0_60 = arith.constant 0 : index
    %197 = vector.load %arg2[%c4, %c0_59, %c0_60] : memref<8x4x8xf32, #tpu.memory_space<vmem>>, vector<1x4x8xf32>
    %198 = vector.shape_cast %197 : vector<1x4x8xf32> to vector<4x8xf32>
    %199 = vector.shape_cast %184 : vector<4x8xf32> to vector<1x4x8xf32>
    tpu.vector_store %arg2[%c4, %c0_59, %c0_60], %199 {strides = array<i32>} : memref<8x4x8xf32, #tpu.memory_space<vmem>>, vector<1x4x8xf32>,
    %c5 = arith.constant 5 : index
    %c0_61 = arith.constant 0 : index
    %c0_62 = arith.constant 0 : index
    %200 = vector.load %arg2[%c5, %c0_61, %c0_62] : memref<8x4x8xf32, #tpu.memory_space<vmem>>, vector<1x4x8xf32>
    %201 = vector.shape_cast %200 : vector<1x4x8xf32> to vector<4x8xf32>
    %202 = vector.shape_cast %184 : vector<4x8xf32> to vector<1x4x8xf32>
    tpu.vector_store %arg2[%c5, %c0_61, %c0_62], %202 {strides = array<i32>} : memref<8x4x8xf32, #tpu.memory_space<vmem>>, vector<1x4x8xf32>,
    %c6 = arith.constant 6 : index
    %c0_63 = arith.constant 0 : index
    %c0_64 = arith.constant 0 : index
    %203 = vector.load %arg2[%c6, %c0_63, %c0_64] : memref<8x4x8xf32, #tpu.memory_space<vmem>>, vector<1x4x8xf32>
    %204 = vector.shape_cast %203 : vector<1x4x8xf32> to vector<4x8xf32>
    %205 = vector.shape_cast %184 : vector<4x8xf32> to vector<1x4x8xf32>
    tpu.vector_store %arg2[%c6, %c0_63, %c0_64], %205 {strides = array<i32>} : memref<8x4x8xf32, #tpu.memory_space<vmem>>, vector<1x4x8xf32>,
    %c7 = arith.constant 7 : index
    %c0_65 = arith.constant 0 : index
    %c0_66 = arith.constant 0 : index
    %206 = vector.load %arg2[%c7, %c0_65, %c0_66] : memref<8x4x8xf32, #tpu.memory_space<vmem>>, vector<1x4x8xf32>
    %207 = vector.shape_cast %206 : vector<1x4x8xf32> to vector<4x8xf32>
    %208 = vector.shape_cast %184 : vector<4x8xf32> to vector<1x4x8xf32>
    tpu.vector_store %arg2[%c7, %c0_65, %c0_66], %208 {strides = array<i32>} : memref<8x4x8xf32, #tpu.memory_space<vmem>>, vector<1x4x8xf32>,
    return
  }
}

</mosaic_0001>

<llo_original>
// kernel: tpu_custom_call.1
$region0: #{tpu_custom_call.1}
  #allocation0 [shape = 'u32[]', space=smem, size = 0x4, offset = 0x4, fixed_abs, tag = 'smem constant byte address 0x4 - core index']
  #allocation1 [shape = 'u32[144,128]{1,0:T(1,128)}', space=vmem, size = 0x12000, scoped, tag = 'internal scratch']
  %s0 = inlined_call_operand.vmem [shape: s32[64,1], index: 0, kind: input, shape index: {}]
  %s1 = inlined_call_operand.vmem [shape: f32[224,32], index: 1, kind: input, shape index: {}]
  %s2 = inlined_call_operand.hbm [shape: f32[8,4,8], index: 2, kind: output, shape index: {}]
  %s3 = sld [smem:[#allocation0]]
  $region18: #{tpu_custom_call.1} parent=0
    _
  %s5 = ssub.s32 1, %s3
  %s6 = scalar_select 0, %s5, %s3
  $region1: #{tpu_custom_call.1} parent=0
    #allocation2 [shape = 'u8[16384]{0}', space=vmem, size = 0x4000, scoped, tag = 'output window, operand 0, single buffered']
    #allocation3 [shape = 's32[1]{0}', space=sflag, size = 0x4, scoped, tag = 'scoped memory for tpu_custom_call.1']
    %7 = vsyncpa [#allocation3], 0
    // Predicated region
    $region2: #{tpu_custom_call.1} parent=1 // pred_check
      _
    $region3: #{tpu_custom_call.1} parent=1 // pred_check_branch
      %9 = sbr.rel (0) target = $region5
    $region4: #{tpu_custom_call.1} parent=1 // pred_region
      _
    $region5: #{tpu_custom_call.1} parent=1 // pred_fallthru
      _
    // Predicated region
    $region6: #{tpu_custom_call.1} parent=1 // pred_check
      _
    $region7: #{tpu_custom_call.1} parent=1 // pred_check_branch
      %11 = sbr.rel (0) target = $region9
    $region8: #{tpu_custom_call.1} parent=1 // pred_region
      _
    $region9: #{tpu_custom_call.1} parent=1 // pred_fallthru
      _
    %v12 = vld [vmem:[%s1] sm:$0xff]
    %v13 = vld [vmem:[%s1 + $0x8] sm:$0xff]
    %v14 = vld [vmem:[%s1 + $0x10] sm:$0xff]
    %v15 = vld [vmem:[%s1 + $0x18] sm:$0xff]
    %v16 = vld [vmem:[%s1 + $0x20] sm:$0xff]
    %v17 = vld [vmem:[%s1 + $0x28] sm:$0xff]
    %v18 = vld [vmem:[%s1 + $0x30] sm:$0xff]
    %v19 = vld [vmem:[%s1 + $0x38] sm:$0xff]
    %v20 = vld [vmem:[%s1 + $0x40] sm:$0xff]
    %v21 = vld [vmem:[%s1 + $0x48] sm:$0xff]
    %v22 = vld [vmem:[%s1 + $0x50] sm:$0xff]
    %v23 = vld [vmem:[%s1 + $0x58] sm:$0xff]
    %v24 = vld [vmem:[%s1 + $0x60] sm:$0xff]
    %v25 = vld [vmem:[%s1 + $0x68] sm:$0xff]
    %v26 = vld [vmem:[%s1 + $0x70] sm:$0xff]
    %v27 = vld [vmem:[%s1 + $0x78] sm:$0xff]
    %v28 = vld [vmem:[%s1 + $0x80] sm:$0xff]
    %v29 = vld [vmem:[%s1 + $0x88] sm:$0xff]
    %v30 = vld [vmem:[%s1 + $0x90] sm:$0xff]
    %v31 = vld [vmem:[%s1 + $0x98] sm:$0xff]
    %v32 = vld [vmem:[%s1 + $0xa0] sm:$0xff]
    %v33 = vld [vmem:[%s1 + $0xa8] sm:$0xff]
    %v34 = vld [vmem:[%s1 + $0xb0] sm:$0xff]
    %v35 = vld [vmem:[%s1 + $0xb8] sm:$0xff]
    %v36 = vld [vmem:[%s1 + $0xc0] sm:$0xff]
    %v37 = vld [vmem:[%s1 + $0xc8] sm:$0xff]
    %v38 = vld [vmem:[%s1 + $0xd0] sm:$0xff]
    %v39 = vld [vmem:[%s1 + $0xd8] sm:$0xff]
    %v40 = vld [vmem:[%s0] sm:$0xff]
    %v41 = vld [vmem:[%s0 + $0x8] sm:$0xff]
    %v42 = vld [vmem:[%s0 + $0x10] sm:$0xff]
    %v43 = vld [vmem:[%s0 + $0x18] sm:$0xff]
    %v44 = vld [vmem:[%s0 + $0x20] sm:$0xff]
    %v45 = vld [vmem:[%s0 + $0x28] sm:$0xff]
    %v46 = vld [vmem:[%s0 + $0x30] sm:$0xff]
    %v47 = vld [vmem:[%s0 + $0x38] sm:$0xff]
    %v48 = vlaneseq
    %v49 = vand.u32 %v48, 127
    %50 = vset.pattern.permute.xlu0 0
    %51 = vperm.xlu0 %50, %v40
    %v52 = vpop.permute.xlu0 %51
    %53 = vset.pattern.permute.xlu0 0
    %54 = vperm.xlu0 %53, %v41
    %v55 = vpop.permute.xlu0 %54
    %56 = vset.pattern.permute.xlu0 0
    %57 = vperm.xlu0 %56, %v42
    %v58 = vpop.permute.xlu0 %57
    %59 = vset.pattern.permute.xlu0 0
    %60 = vperm.xlu0 %59, %v43
    %v61 = vpop.permute.xlu0 %60
    %62 = vset.pattern.permute.xlu0 0
    %63 = vperm.xlu0 %62, %v44
    %v64 = vpop.permute.xlu0 %63
    %65 = vset.pattern.permute.xlu0 0
    %66 = vperm.xlu0 %65, %v45
    %v67 = vpop.permute.xlu0 %66
    %68 = vset.pattern.permute.xlu0 0
    %69 = vperm.xlu0 %68, %v46
    %v70 = vpop.permute.xlu0 %69
    %71 = vset.pattern.permute.xlu0 0
    %72 = vperm.xlu0 %71, %v47
    %v73 = vpop.permute.xlu0 %72
    %vm74 = vcmp.eq.s32.totalorder %v49, %v52
    %vm75 = vcmp.eq.s32.totalorder %v49, %v55
    %vm76 = vcmp.eq.s32.totalorder %v49, %v58
    %vm77 = vcmp.eq.s32.totalorder %v49, %v61
    %vm78 = vcmp.eq.s32.totalorder %v49, %v64
    %vm79 = vcmp.eq.s32.totalorder %v49, %v67
    %vm80 = vcmp.eq.s32.totalorder %v49, %v70
    %vm81 = vcmp.eq.s32.totalorder %v49, %v73
    %v82 = vsel %vm74, 1.0, 0.0
    %v83 = vsel %vm75, 1.0, 0.0
    %v84 = vsel %vm76, 1.0, 0.0
    %v85 = vsel %vm77, 1.0, 0.0
    %v86 = vsel %vm78, 1.0, 0.0
    %v87 = vsel %vm79, 1.0, 0.0
    %v88 = vsel %vm80, 1.0, 0.0
    %v89 = vsel %vm81, 1.0, 0.0
    %v90 = vlaneseq
    %v91 = vshrl.u32 %v90, 7
    %v92 = vsub.s32 0, %v91
    %v93 = vrot.slane %v39, %v92
    %vm94 = vcmask 457728
    %v96 = vsel %vm94, %v82, 0
    %v99 = vsel %vm94, %v83, 0
    %v102 = vsel %vm94, %v84, 0
    %v105 = vsel %vm94, %v85, 0
    %v108 = vsel %vm94, %v86, 0
    %v111 = vsel %vm94, %v87, 0
    %v114 = vsel %vm94, %v88, 0
    %v117 = vsel %vm94, %v89, 0
    %119 = vmatprep.subr.mxu0 0.0
    %120 = vmatpush1.msra.mxu0 %v12
    %121 = vmatprep.subr.mxu0 0.0
    %122 = vmatpush1.msra.mxu0 %v13
    %123 = vmatprep.subr.mxu0 0.0
    %124 = vmatpush1.msra.mxu0 %v14
    %125 = vmatprep.subr.mxu0 0.0
    %126 = vmatpush1.msra.mxu0 %v15
    %127 = vmatprep.subr.mxu0 0.0
    %128 = vmatpush1.msra.mxu0 %v16
    %129 = vmatprep.subr.mxu0 0.0
    %130 = vmatpush1.msra.mxu0 %v17
    %131 = vmatprep.subr.mxu0 0.0
    %132 = vmatpush1.msra.mxu0 %v18
    %133 = vmatprep.subr.mxu0 0.0
    %134 = vmatpush1.msra.mxu0 0.0
    %135 = vmatprep.subr.mxu0 0.0
    %136 = vmatpush1.msra.mxu0 0.0
    %137 = vmatprep.subr.mxu0 0.0
    %138 = vmatpush1.msra.mxu0 0.0
    %139 = vmatprep.subr.mxu0 0.0
    %140 = vmatpush1.msra.mxu0 0.0
    %141 = vmatprep.subr.mxu0 0.0
    %142 = vmatpush1.msra.mxu0 0.0
    %143 = vmatprep.subr.mxu0 0.0
    %144 = vmatpush1.msra.mxu0 0.0
    %145 = vmatprep.subr.mxu0 0.0
    %146 = vmatpush1.msra.mxu0 0.0
    %147 = vmatprep.subr.mxu0 0.0
    %148 = vmatpush1.msra.mxu0 0.0
    %149 = vmatprep.subr.mxu0 0.0
    %150 = vmatpush1.msra.mxu0 0.0
    %151 = vmatprep.subr.mxu0 0.0
    %152 = vmatpush1.msra.mxu0 0.0
    %153 = vmatprep.subr.mxu0 0.0
    %154 = vmatpush1.msra.mxu0 0.0
    %155 = vmatprep.subr.mxu0 0.0
    %156 = vmatpush1.msra.mxu0 0.0
    %157 = vmatprep.subr.mxu0 0.0
    %158 = vmatpush1.msra.mxu0 0.0
    %159 = vmatprep.subr.mxu0 0.0
    %160 = vmatpush1.msra.mxu0 0.0
    %161 = vmatprep.subr.mxu0 0.0
    %162 = vmatpush1.msra.mxu0 0.0
    %163 = vmatprep.subr.mxu0 0.0
    %164 = vmatpush1.msra.mxu0 0.0
    %165 = vmatprep.subr.mxu0 0.0
    %166 = vmatpush1.msra.mxu0 0.0
    %167 = vmatprep.subr.mxu0 0.0
    %168 = vmatpush1.msra.mxu0 0.0
    %169 = vmatprep.subr.mxu0 0.0
    %170 = vmatpush1.msra.mxu0 0.0
    %171 = vmatprep.subr.mxu0 0.0
    %172 = vmatpush1.msra.mxu0 0.0
    %173 = vmatprep.subr.mxu0 0.0
    %174 = vmatpush1.msra.mxu0 0.0
    %175 = vmatprep.subr.mxu0 0.0
    %176 = vmatpush1.msra.mxu0 0.0
    %177 = vmatprep.subr.mxu0 0.0
    %178 = vmatpush1.msra.mxu0 0.0
    %179 = vmatprep.subr.mxu0 0.0
    %180 = vmatpush1.msra.mxu0 0.0
    %181 = vmatprep.subr.mxu0 0.0
    %182 = vmatpush1.msra.mxu0 0.0
    %183 = vmatprep.mubr.f32.mxu0 0.0
    %184 = vmatmul.mubr.f32.gmra.mrb[0].mxu0 %v96
    %v185 = vpop.f32.mrb[0].mxu0
    %v186 = vadd.f32 %v93, %v185
    %v187 = vpop.f32.mrb[0].mxu0
    %188 = vmatprep.mubr.f32.mxu0 0.0
    %189 = vmatmul.mubr.f32.gmra.mrb[0].mxu0 %v99
    %v190 = vpop.f32.mrb[0].mxu0
    %v191 = vadd.f32 %v93, %v190
    %v192 = vpop.f32.mrb[0].mxu0
    %193 = vmatprep.mubr.f32.mxu0 0.0
    %194 = vmatmul.mubr.f32.gmra.mrb[0].mxu0 %v102
    %v195 = vpop.f32.mrb[0].mxu0
    %v196 = vadd.f32 %v93, %v195
    %v197 = vpop.f32.mrb[0].mxu0
    %198 = vmatprep.mubr.f32.mxu0 0.0
    %199 = vmatmul.mubr.f32.gmra.mrb[0].mxu0 %v105
    %v200 = vpop.f32.mrb[0].mxu0
    %v201 = vadd.f32 %v93, %v200
    %v202 = vpop.f32.mrb[0].mxu0
    %203 = vmatprep.mubr.f32.mxu0 0.0
    %204 = vmatmul.mubr.f32.gmra.mrb[0].mxu0 %v108
    %v205 = vpop.f32.mrb[0].mxu0
    %v206 = vadd.f32 %v93, %v205
    %v207 = vpop.f32.mrb[0].mxu0
    %208 = vmatprep.mubr.f32.mxu0 0.0
    %209 = vmatmul.mubr.f32.gmra.mrb[0].mxu0 %v111
    %v210 = vpop.f32.mrb[0].mxu0
    %v211 = vadd.f32 %v93, %v210
    %v212 = vpop.f32.mrb[0].mxu0
    %213 = vmatprep.mubr.f32.mxu0 0.0
    %214 = vmatmul.mubr.f32.gmra.mrb[0].mxu0 %v114
    %v215 = vpop.f32.mrb[0].mxu0
    %v216 = vadd.f32 %v93, %v215
    %v217 = vpop.f32.mrb[0].mxu0
    %218 = vmatprep.mubr.f32.mxu0 0.0
    %219 = vmatmul.mubr.f32.gmra.mrb[0].mxu0 %v117
    %v220 = vpop.f32.mrb[0].mxu0
    %v221 = vadd.f32 %v93, %v220
    %v222 = vpop.f32.mrb[0].mxu0
    %223 = vdwg.mxu0
    %vm224 = vcmask 261120
    %v226 = vsel %vm224, 0.0, 0
    %228 = vmatprep.subr.mxu0 0.0
    %229 = vmatpush1.msra.mxu0 %v27
    %230 = vmatprep.subr.mxu0 0.0
    %231 = vmatpush1.msra.mxu0 %v28
    %232 = vmatprep.subr.mxu0 0.0
    %233 = vmatpush1.msra.mxu0 %v29
    %234 = vmatprep.subr.mxu0 0.0
    %235 = vmatpush1.msra.mxu0 %v30
    %236 = vmatprep.subr.mxu0 0.0
    %237 = vmatpush1.msra.mxu0 0.0
    %238 = vmatprep.subr.mxu0 0.0
    %239 = vmatpush1.msra.mxu0 0.0
    %240 = vmatprep.subr.mxu0 0.0
    %241 = vmatpush1.msra.mxu0 0.0
    %242 = vmatprep.subr.mxu0 0.0
    %243 = vmatpush1.msra.mxu0 0.0
    %244 = vmatprep.subr.mxu0 0.0
    %245 = vmatpush1.msra.mxu0 0.0
    %246 = vmatprep.subr.mxu0 0.0
    %247 = vmatpush1.msra.mxu0 0.0
    %248 = vmatprep.subr.mxu0 0.0
    %249 = vmatpush1.msra.mxu0 0.0
    %250 = vmatprep.subr.mxu0 0.0
    %251 = vmatpush1.msra.mxu0 0.0
    %252 = vmatprep.subr.mxu0 0.0
    %253 = vmatpush1.msra.mxu0 0.0
    %254 = vmatprep.subr.mxu0 0.0
    %255 = vmatpush1.msra.mxu0 0.0
    %256 = vmatprep.subr.mxu0 0.0
    %257 = vmatpush1.msra.mxu0 0.0
    %258 = vmatprep.subr.mxu0 0.0
    %259 = vmatpush1.msra.mxu0 0.0
    %260 = vmatprep.subr.mxu0 0.0
    %261 = vmatpush1.msra.mxu0 0.0
    %262 = vmatprep.subr.mxu0 0.0
    %263 = vmatpush1.msra.mxu0 0.0
    %264 = vmatprep.subr.mxu0 0.0
    %265 = vmatpush1.msra.mxu0 0.0
    %266 = vmatprep.subr.mxu0 0.0
    %267 = vmatpush1.msra.mxu0 0.0
    %268 = vmatprep.subr.mxu0 0.0
    %269 = vmatpush1.msra.mxu0 0.0
    %270 = vmatprep.subr.mxu0 0.0
    %271 = vmatpush1.msra.mxu0 0.0
    %272 = vmatprep.subr.mxu0 0.0
    %273 = vmatpush1.msra.mxu0 0.0
    %274 = vmatprep.subr.mxu0 0.0
    %275 = vmatpush1.msra.mxu0 0.0
    %276 = vmatprep.subr.mxu0 0.0
    %277 = vmatpush1.msra.mxu0 0.0
    %278 = vmatprep.subr.mxu0 0.0
    %279 = vmatpush1.msra.mxu0 0.0
    %280 = vmatprep.subr.mxu0 0.0
    %281 = vmatpush1.msra.mxu0 0.0
    %282 = vmatprep.subr.mxu0 0.0
    %283 = vmatpush1.msra.mxu0 0.0
    %284 = vmatprep.subr.mxu0 0.0
    %285 = vmatpush1.msra.mxu0 0.0
    %286 = vmatprep.subr.mxu0 0.0
    %287 = vmatpush1.msra.mxu0 0.0
    %288 = vmatprep.subr.mxu0 0.0
    %289 = vmatpush1.msra.mxu0 0.0
    %290 = vmatprep.subr.mxu0 0.0
    %291 = vmatpush1.msra.mxu0 0.0
    %292 = vmatprep.mubr.f32.mxu0 0.0
    %293 = vmatmul.mubr.f32.gmra.mrb[0].mxu0 %v226
    %v294 = vpop.f32.mrb[0].mxu0
    %v295 = vadd.f32 0.0, %v294
    %v296 = vpop.f32.mrb[0].mxu0
    %297 = vdwg.mxu0
    %298 = vmatprep.subr.mxu0 0.0
    %299 = vmatpush1.msra.mxu0 %v19
    %300 = vmatprep.subr.mxu0 0.0
    %301 = vmatpush1.msra.mxu0 %v20
    %302 = vmatprep.subr.mxu0 0.0
    %303 = vmatpush1.msra.mxu0 %v21
    %304 = vmatprep.subr.mxu0 0.0
    %305 = vmatpush1.msra.mxu0 %v22
    %306 = vmatprep.subr.mxu0 0.0
    %307 = vmatpush1.msra.mxu0 0.0
    %308 = vmatprep.subr.mxu0 0.0
    %309 = vmatpush1.msra.mxu0 0.0
    %310 = vmatprep.subr.mxu0 0.0
    %311 = vmatpush1.msra.mxu0 0.0
    %312 = vmatprep.subr.mxu0 0.0
    %313 = vmatpush1.msra.mxu0 0.0
    %314 = vmatprep.subr.mxu0 0.0
    %315 = vmatpush1.msra.mxu0 0.0
    %316 = vmatprep.subr.mxu0 0.0
    %317 = vmatpush1.msra.mxu0 0.0
    %318 = vmatprep.subr.mxu0 0.0
    %319 = vmatpush1.msra.mxu0 0.0
    %320 = vmatprep.subr.mxu0 0.0
    %321 = vmatpush1.msra.mxu0 0.0
    %322 = vmatprep.subr.mxu0 0.0
    %323 = vmatpush1.msra.mxu0 0.0
    %324 = vmatprep.subr.mxu0 0.0
    %325 = vmatpush1.msra.mxu0 0.0
    %326 = vmatprep.subr.mxu0 0.0
    %327 = vmatpush1.msra.mxu0 0.0
    %328 = vmatprep.subr.mxu0 0.0
    %329 = vmatpush1.msra.mxu0 0.0
    %330 = vmatprep.subr.mxu0 0.0
    %331 = vmatpush1.msra.mxu0 0.0
    %332 = vmatprep.subr.mxu0 0.0
    %333 = vmatpush1.msra.mxu0 0.0
    %334 = vmatprep.subr.mxu0 0.0
    %335 = vmatpush1.msra.mxu0 0.0
    %336 = vmatprep.subr.mxu0 0.0
    %337 = vmatpush1.msra.mxu0 0.0
    %338 = vmatprep.subr.mxu0 0.0
    %339 = vmatpush1.msra.mxu0 0.0
    %340 = vmatprep.subr.mxu0 0.0
    %341 = vmatpush1.msra.mxu0 0.0
    %342 = vmatprep.subr.mxu0 0.0
    %343 = vmatpush1.msra.mxu0 0.0
    %344 = vmatprep.subr.mxu0 0.0
    %345 = vmatpush1.msra.mxu0 0.0
    %346 = vmatprep.subr.mxu0 0.0
    %347 = vmatpush1.msra.mxu0 0.0
    %348 = vmatprep.subr.mxu0 0.0
    %349 = vmatpush1.msra.mxu0 0.0
    %350 = vmatprep.subr.mxu0 0.0
    %351 = vmatpush1.msra.mxu0 0.0
    %352 = vmatprep.subr.mxu0 0.0
    %353 = vmatpush1.msra.mxu0 0.0
    %354 = vmatprep.subr.mxu0 0.0
    %355 = vmatpush1.msra.mxu0 0.0
    %356 = vmatprep.subr.mxu0 0.0
    %357 = vmatpush1.msra.mxu0 0.0
    %358 = vmatprep.subr.mxu0 0.0
    %359 = vmatpush1.msra.mxu0 0.0
    %360 = vmatprep.subr.mxu0 0.0
    %361 = vmatpush1.msra.mxu0 0.0
    %362 = vmatprep.mubr.f32.mxu0 0.0
    %363 = vmatmul.mubr.f32.gmra.mrb[0].mxu0 %v226
    %v364 = vpop.f32.mrb[0].mxu0
    %v365 = vadd.f32 0.0, %v364
    %v366 = vpop.f32.mrb[0].mxu0
    %367 = vdwg.mxu0
    %v368 = vadd.f32 %v186, %v365
    %v369 = vtanh.pop %v368
    %v371 = vsel %vm224, %v369, 0
    %373 = vmatprep.subr.mxu0 0.0
    %374 = vmatpush1.msra.mxu0 %v23
    %375 = vmatprep.subr.mxu0 0.0
    %376 = vmatpush1.msra.mxu0 %v24
    %377 = vmatprep.subr.mxu0 0.0
    %378 = vmatpush1.msra.mxu0 %v25
    %379 = vmatprep.subr.mxu0 0.0
    %380 = vmatpush1.msra.mxu0 %v26
    %381 = vmatprep.subr.mxu0 0.0
    %382 = vmatpush1.msra.mxu0 0.0
    %383 = vmatprep.subr.mxu0 0.0
    %384 = vmatpush1.msra.mxu0 0.0
    %385 = vmatprep.subr.mxu0 0.0
    %386 = vmatpush1.msra.mxu0 0.0
    %387 = vmatprep.subr.mxu0 0.0
    %388 = vmatpush1.msra.mxu0 0.0
    %389 = vmatprep.subr.mxu0 0.0
    %390 = vmatpush1.msra.mxu0 0.0
    %391 = vmatprep.subr.mxu0 0.0
    %392 = vmatpush1.msra.mxu0 0.0
    %393 = vmatprep.subr.mxu0 0.0
    %394 = vmatpush1.msra.mxu0 0.0
    %395 = vmatprep.subr.mxu0 0.0
    %396 = vmatpush1.msra.mxu0 0.0
    %397 = vmatprep.subr.mxu0 0.0
    %398 = vmatpush1.msra.mxu0 0.0
    %399 = vmatprep.subr.mxu0 0.0
    %400 = vmatpush1.msra.mxu0 0.0
    %401 = vmatprep.subr.mxu0 0.0
    %402 = vmatpush1.msra.mxu0 0.0
    %403 = vmatprep.subr.mxu0 0.0
    %404 = vmatpush1.msra.mxu0 0.0
    %405 = vmatprep.subr.mxu0 0.0
    %406 = vmatpush1.msra.mxu0 0.0
    %407 = vmatprep.subr.mxu0 0.0
    %408 = vmatpush1.msra.mxu0 0.0
    %409 = vmatprep.subr.mxu0 0.0
    %410 = vmatpush1.msra.mxu0 0.0
    %411 = vmatprep.subr.mxu0 0.0
    %412 = vmatpush1.msra.mxu0 0.0
    %413 = vmatprep.subr.mxu0 0.0
    %414 = vmatpush1.msra.mxu0 0.0
    %415 = vmatprep.subr.mxu0 0.0
    %416 = vmatpush1.msra.mxu0 0.0
    %417 = vmatprep.subr.mxu0 0.0
    %418 = vmatpush1.msra.mxu0 0.0
    %419 = vmatprep.subr.mxu0 0.0
    %420 = vmatpush1.msra.mxu0 0.0
    %421 = vmatprep.subr.mxu0 0.0
    %422 = vmatpush1.msra.mxu0 0.0
    %423 = vmatprep.subr.mxu0 0.0
    %424 = vmatpush1.msra.mxu0 0.0
    %425 = vmatprep.subr.mxu0 0.0
    %426 = vmatpush1.msra.mxu0 0.0
    %427 = vmatprep.subr.mxu0 0.0
    %428 = vmatpush1.msra.mxu0 0.0
    %429 = vmatprep.subr.mxu0 0.0
    %430 = vmatpush1.msra.mxu0 0.0
    %431 = vmatprep.subr.mxu0 0.0
    %432 = vmatpush1.msra.mxu0 0.0
    %433 = vmatprep.subr.mxu0 0.0
    %434 = vmatpush1.msra.mxu0 0.0
    %435 = vmatprep.subr.mxu0 0.0
    %436 = vmatpush1.msra.mxu0 0.0
    %437 = vmatprep.mubr.f32.mxu0 0.0
    %438 = vmatmul.mubr.f32.gmra.mrb[0].mxu0 %v371
    %v439 = vpop.f32.mrb[0].mxu0
    %v440 = vadd.f32 %v295, %v439
    %v441 = vpop.f32.mrb[0].mxu0
    %442 = vdwg.mxu0
    %v443 = vlaneseq
    %v444 = vshrl.u32 %v443, 7
    %v445 = vsub.s32 1, %v444
    %v446 = vrot.slane %v39, %v445
    %v447 = vadd.f32 %v440, %v446
    %v448 = vtanh.pop %v447
    %v449 = vlaneseq
    %v450 = vshrl.u32 %v449, 7
    %v451 = vsub.s32 2, %v450
    %v452 = vrot.slane %v39, %v451
    %v453 = vmul.f32 %v448, %v452
    %v454 = vsel %vm224, %v453, 0.0
    %455 = vadd.xlane.f32.xlu0 %v454
    %v456 = vpop.xlane.xlu0 %455
    %v458 = vsel %vm224, %v448, 0
    %460 = vmatprep.subr.mxu0 0.0
    %461 = vmatpush1.msra.mxu0 %v27
    %462 = vmatprep.subr.mxu0 0.0
    %463 = vmatpush1.msra.mxu0 %v28
    %464 = vmatprep.subr.mxu0 0.0
    %465 = vmatpush1.msra.mxu0 %v29
    %466 = vmatprep.subr.mxu0 0.0
    %467 = vmatpush1.msra.mxu0 %v30
    %468 = vmatprep.subr.mxu0 0.0
    %469 = vmatpush1.msra.mxu0 0.0
    %470 = vmatprep.subr.mxu0 0.0
    %471 = vmatpush1.msra.mxu0 0.0
    %472 = vmatprep.subr.mxu0 0.0
    %473 = vmatpush1.msra.mxu0 0.0
    %474 = vmatprep.subr.mxu0 0.0
    %475 = vmatpush1.msra.mxu0 0.0
    %476 = vmatprep.subr.mxu0 0.0
    %477 = vmatpush1.msra.mxu0 0.0
    %478 = vmatprep.subr.mxu0 0.0
    %479 = vmatpush1.msra.mxu0 0.0
    %480 = vmatprep.subr.mxu0 0.0
    %481 = vmatpush1.msra.mxu0 0.0
    %482 = vmatprep.subr.mxu0 0.0
    %483 = vmatpush1.msra.mxu0 0.0
    %484 = vmatprep.subr.mxu0 0.0
    %485 = vmatpush1.msra.mxu0 0.0
    %486 = vmatprep.subr.mxu0 0.0
    %487 = vmatpush1.msra.mxu0 0.0
    %488 = vmatprep.subr.mxu0 0.0
    %489 = vmatpush1.msra.mxu0 0.0
    %490 = vmatprep.subr.mxu0 0.0
    %491 = vmatpush1.msra.mxu0 0.0
    %492 = vmatprep.subr.mxu0 0.0
    %493 = vmatpush1.msra.mxu0 0.0
    %494 = vmatprep.subr.mxu0 0.0
    %495 = vmatpush1.msra.mxu0 0.0
    %496 = vmatprep.subr.mxu0 0.0
    %497 = vmatpush1.msra.mxu0 0.0
    %498 = vmatprep.subr.mxu0 0.0
    %499 = vmatpush1.msra.mxu0 0.0
    %500 = vmatprep.subr.mxu0 0.0
    %501 = vmatpush1.msra.mxu0 0.0
    %502 = vmatprep.subr.mxu0 0.0
    %503 = vmatpush1.msra.mxu0 0.0
    %504 = vmatprep.subr.mxu0 0.0
    %505 = vmatpush1.msra.mxu0 0.0
    %506 = vmatprep.subr.mxu0 0.0
    %507 = vmatpush1.msra.mxu0 0.0
    %508 = vmatprep.subr.mxu0 0.0
    %509 = vmatpush1.msra.mxu0 0.0
    %510 = vmatprep.subr.mxu0 0.0
    %511 = vmatpush1.msra.mxu0 0.0
    %512 = vmatprep.subr.mxu0 0.0
    %513 = vmatpush1.msra.mxu0 0.0
    %514 = vmatprep.subr.mxu0 0.0
    %515 = vmatpush1.msra.mxu0 0.0
    %516 = vmatprep.subr.mxu0 0.0
    %517 = vmatpush1.msra.mxu0 0.0
    %518 = vmatprep.subr.mxu0 0.0
    %519 = vmatpush1.msra.mxu0 0.0
    %520 = vmatprep.subr.mxu0 0.0
    %521 = vmatpush1.msra.mxu0 0.0
    %522 = vmatprep.subr.mxu0 0.0
    %523 = vmatpush1.msra.mxu0 0.0
    %524 = vmatprep.mubr.f32.mxu0 0.0
    %525 = vmatmul.mubr.f32.gmra.mrb[0].mxu0 %v458
    %v526 = vpop.f32.mrb[0].mxu0
    %v527 = vadd.f32 0.0, %v526
    %v528 = vpop.f32.mrb[0].mxu0
    %529 = vdwg.mxu0
    %530 = vmatprep.subr.mxu0 0.0
    %531 = vmatpush1.msra.mxu0 %v19
    %532 = vmatprep.subr.mxu0 0.0
    %533 = vmatpush1.msra.mxu0 %v20
    %534 = vmatprep.subr.mxu0 0.0
    %535 = vmatpush1.msra.mxu0 %v21
    %536 = vmatprep.subr.mxu0 0.0
    %537 = vmatpush1.msra.mxu0 %v22
    %538 = vmatprep.subr.mxu0 0.0
    %539 = vmatpush1.msra.mxu0 0.0
    %540 = vmatprep.subr.mxu0 0.0
    %541 = vmatpush1.msra.mxu0 0.0
    %542 = vmatprep.subr.mxu0 0.0
    %543 = vmatpush1.msra.mxu0 0.0
    %544 = vmatprep.subr.mxu0 0.0
    %545 = vmatpush1.msra.mxu0 0.0
    %546 = vmatprep.subr.mxu0 0.0
    %547 = vmatpush1.msra.mxu0 0.0
    %548 = vmatprep.subr.mxu0 0.0
    %549 = vmatpush1.msra.mxu0 0.0
    %550 = vmatprep.subr.mxu0 0.0
    %551 = vmatpush1.msra.mxu0 0.0
    %552 = vmatprep.subr.mxu0 0.0
    %553 = vmatpush1.msra.mxu0 0.0
    %554 = vmatprep.subr.mxu0 0.0
    %555 = vmatpush1.msra.mxu0 0.0
    %556 = vmatprep.subr.mxu0 0.0
    %557 = vmatpush1.msra.mxu0 0.0
    %558 = vmatprep.subr.mxu0 0.0
    %559 = vmatpush1.msra.mxu0 0.0
    %560 = vmatprep.subr.mxu0 0.0
    %561 = vmatpush1.msra.mxu0 0.0
    %562 = vmatprep.subr.mxu0 0.0
    %563 = vmatpush1.msra.mxu0 0.0
    %564 = vmatprep.subr.mxu0 0.0
    %565 = vmatpush1.msra.mxu0 0.0
    %566 = vmatprep.subr.mxu0 0.0
    %567 = vmatpush1.msra.mxu0 0.0
    %568 = vmatprep.subr.mxu0 0.0
    %569 = vmatpush1.msra.mxu0 0.0
    %570 = vmatprep.subr.mxu0 0.0
    %571 = vmatpush1.msra.mxu0 0.0
    %572 = vmatprep.subr.mxu0 0.0
    %573 = vmatpush1.msra.mxu0 0.0
    %574 = vmatprep.subr.mxu0 0.0
    %575 = vmatpush1.msra.mxu0 0.0
    %576 = vmatprep.subr.mxu0 0.0
    %577 = vmatpush1.msra.mxu0 0.0
    %578 = vmatprep.subr.mxu0 0.0
    %579 = vmatpush1.msra.mxu0 0.0
    %580 = vmatprep.subr.mxu0 0.0
    %581 = vmatpush1.msra.mxu0 0.0
    %582 = vmatprep.subr.mxu0 0.0
    %583 = vmatpush1.msra.mxu0 0.0
    %584 = vmatprep.subr.mxu0 0.0
    %585 = vmatpush1.msra.mxu0 0.0
    %586 = vmatprep.subr.mxu0 0.0
    %587 = vmatpush1.msra.mxu0 0.0
    %588 = vmatprep.subr.mxu0 0.0
    %589 = vmatpush1.msra.mxu0 0.0
    %590 = vmatprep.subr.mxu0 0.0
    %591 = vmatpush1.msra.mxu0 0.0
    %592 = vmatprep.subr.mxu0 0.0
    %593 = vmatpush1.msra.mxu0 0.0
    %594 = vmatprep.mubr.f32.mxu0 0.0
    %595 = vmatmul.mubr.f32.gmra.mrb[0].mxu0 %v371
    %v596 = vpop.f32.mrb[0].mxu0
    %v597 = vadd.f32 0.0, %v596
    %v598 = vpop.f32.mrb[0].mxu0
    %599 = vdwg.mxu0
    %v600 = vadd.f32 %v191, %v597
    %v601 = vtanh.pop %v600
    %v603 = vsel %vm224, %v601, 0
    %605 = vmatprep.subr.mxu0 0.0
    %606 = vmatpush1.msra.mxu0 %v23
    %607 = vmatprep.subr.mxu0 0.0
    %608 = vmatpush1.msra.mxu0 %v24
    %609 = vmatprep.subr.mxu0 0.0
    %610 = vmatpush1.msra.mxu0 %v25
    %611 = vmatprep.subr.mxu0 0.0
    %612 = vmatpush1.msra.mxu0 %v26
    %613 = vmatprep.subr.mxu0 0.0
    %614 = vmatpush1.msra.mxu0 0.0
    %615 = vmatprep.subr.mxu0 0.0
    %616 = vmatpush1.msra.mxu0 0.0
    %617 = vmatprep.subr.mxu0 0.0
    %618 = vmatpush1.msra.mxu0 0.0
    %619 = vmatprep.subr.mxu0 0.0
    %620 = vmatpush1.msra.mxu0 0.0
    %621 = vmatprep.subr.mxu0 0.0
    %622 = vmatpush1.msra.mxu0 0.0
    %623 = vmatprep.subr.mxu0 0.0
    %624 = vmatpush1.msra.mxu0 0.0
    %625 = vmatprep.subr.mxu0 0.0
    %626 = vmatpush1.msra.mxu0 0.0
    %627 = vmatprep.subr.mxu0 0.0
    %628 = vmatpush1.msra.mxu0 0.0
    %629 = vmatprep.subr.mxu0 0.0
    %630 = vmatpush1.msra.mxu0 0.0
    %631 = vmatprep.subr.mxu0 0.0
    %632 = vmatpush1.msra.mxu0 0.0
    %633 = vmatprep.subr.mxu0 0.0
    %634 = vmatpush1.msra.mxu0 0.0
    %635 = vmatprep.subr.mxu0 0.0
    %636 = vmatpush1.msra.mxu0 0.0
    %637 = vmatprep.subr.mxu0 0.0
    %638 = vmatpush1.msra.mxu0 0.0
    %639 = vmatprep.subr.mxu0 0.0
    %640 = vmatpush1.msra.mxu0 0.0
    %641 = vmatprep.subr.mxu0 0.0
    %642 = vmatpush1.msra.mxu0 0.0
    %643 = vmatprep.subr.mxu0 0.0
    %644 = vmatpush1.msra.mxu0 0.0
    %645 = vmatprep.subr.mxu0 0.0
    %646 = vmatpush1.msra.mxu0 0.0
    %647 = vmatprep.subr.mxu0 0.0
    %648 = vmatpush1.msra.mxu0 0.0
    %649 = vmatprep.subr.mxu0 0.0
    %650 = vmatpush1.msra.mxu0 0.0
    %651 = vmatprep.subr.mxu0 0.0
    %652 = vmatpush1.msra.mxu0 0.0
    %653 = vmatprep.subr.mxu0 0.0
    %654 = vmatpush1.msra.mxu0 0.0
    %655 = vmatprep.subr.mxu0 0.0
    %656 = vmatpush1.msra.mxu0 0.0
    %657 = vmatprep.subr.mxu0 0.0
    %658 = vmatpush1.msra.mxu0 0.0
    %659 = vmatprep.subr.mxu0 0.0
    %660 = vmatpush1.msra.mxu0 0.0
    %661 = vmatprep.subr.mxu0 0.0
    %662 = vmatpush1.msra.mxu0 0.0
    %663 = vmatprep.subr.mxu0 0.0
    %664 = vmatpush1.msra.mxu0 0.0
    %665 = vmatprep.subr.mxu0 0.0
    %666 = vmatpush1.msra.mxu0 0.0
    %667 = vmatprep.subr.mxu0 0.0
    %668 = vmatpush1.msra.mxu0 0.0
    %669 = vmatprep.mubr.f32.mxu0 0.0
    %670 = vmatmul.mubr.f32.gmra.mrb[0].mxu0 %v603
    %v671 = vpop.f32.mrb[0].mxu0
    %v672 = vadd.f32 %v527, %v671
    %v673 = vpop.f32.mrb[0].mxu0
    %674 = vdwg.mxu0
    %v675 = vadd.f32 %v672, %v446
    %v676 = vtanh.pop %v675
    %v677 = vmul.f32 %v676, %v452
    %v678 = vsel %vm224, %v677, 0.0
    %679 = vadd.xlane.f32.xlu0 %v678
    %v680 = vpop.xlane.xlu0 %679
    %v682 = vsel %vm224, %v676, 0
    %684 = vmatprep.subr.mxu0 0.0
    %685 = vmatpush1.msra.mxu0 %v27
    %686 = vmatprep.subr.mxu0 0.0
    %687 = vmatpush1.msra.mxu0 %v28
    %688 = vmatprep.subr.mxu0 0.0
    %689 = vmatpush1.msra.mxu0 %v29
    %690 = vmatprep.subr.mxu0 0.0
    %691 = vmatpush1.msra.mxu0 %v30
    %692 = vmatprep.subr.mxu0 0.0
    %693 = vmatpush1.msra.mxu0 0.0
    %694 = vmatprep.subr.mxu0 0.0
    %695 = vmatpush1.msra.mxu0 0.0
    %696 = vmatprep.subr.mxu0 0.0
    %697 = vmatpush1.msra.mxu0 0.0
    %698 = vmatprep.subr.mxu0 0.0
    %699 = vmatpush1.msra.mxu0 0.0
    %700 = vmatprep.subr.mxu0 0.0
    %701 = vmatpush1.msra.mxu0 0.0
    %702 = vmatprep.subr.mxu0 0.0
    %703 = vmatpush1.msra.mxu0 0.0
    %704 = vmatprep.subr.mxu0 0.0
    %705 = vmatpush1.msra.mxu0 0.0
    %706 = vmatprep.subr.mxu0 0.0
    %707 = vmatpush1.msra.mxu0 0.0
    %708 = vmatprep.subr.mxu0 0.0
    %709 = vmatpush1.msra.mxu0 0.0
    %710 = vmatprep.subr.mxu0 0.0
    %711 = vmatpush1.msra.mxu0 0.0
    %712 = vmatprep.subr.mxu0 0.0
    %713 = vmatpush1.msra.mxu0 0.0
    %714 = vmatprep.subr.mxu0 0.0
    %715 = vmatpush1.msra.mxu0 0.0
    %716 = vmatprep.subr.mxu0 0.0
    %717 = vmatpush1.msra.mxu0 0.0
    %718 = vmatprep.subr.mxu0 0.0
    %719 = vmatpush1.msra.mxu0 0.0
    %720 = vmatprep.subr.mxu0 0.0
    %721 = vmatpush1.msra.mxu0 0.0
    %722 = vmatprep.subr.mxu0 0.0
    %723 = vmatpush1.msra.mxu0 0.0
    %724 = vmatprep.subr.mxu0 0.0
    %725 = vmatpush1.msra.mxu0 0.0
    %726 = vmatprep.subr.mxu0 0.0
    %727 = vmatpush1.msra.mxu0 0.0
    %728 = vmatprep.subr.mxu0 0.0
    %729 = vmatpush1.msra.mxu0 0.0
    %730 = vmatprep.subr.mxu0 0.0
    %731 = vmatpush1.msra.mxu0 0.0
    %732 = vmatprep.subr.mxu0 0.0
    %733 = vmatpush1.msra.mxu0 0.0
    %734 = vmatprep.subr.mxu0 0.0
    %735 = vmatpush1.msra.mxu0 0.0
    %736 = vmatprep.subr.mxu0 0.0
    %737 = vmatpush1.msra.mxu0 0.0
    %738 = vmatprep.subr.mxu0 0.0
    %739 = vmatpush1.msra.mxu0 0.0
    %740 = vmatprep.subr.mxu0 0.0
    %741 = vmatpush1.msra.mxu0 0.0
    %742 = vmatprep.subr.mxu0 0.0
    %743 = vmatpush1.msra.mxu0 0.0
    %744 = vmatprep.subr.mxu0 0.0
    %745 = vmatpush1.msra.mxu0 0.0
    %746 = vmatprep.subr.mxu0 0.0
    %747 = vmatpush1.msra.mxu0 0.0
    %748 = vmatprep.mubr.f32.mxu0 0.0
    %749 = vmatmul.mubr.f32.gmra.mrb[0].mxu0 %v682
    %v750 = vpop.f32.mrb[0].mxu0
    %v751 = vadd.f32 0.0, %v750
    %v752 = vpop.f32.mrb[0].mxu0
    %753 = vdwg.mxu0
    %754 = vmatprep.subr.mxu0 0.0
    %755 = vmatpush1.msra.mxu0 %v19
    %756 = vmatprep.subr.mxu0 0.0
    %757 = vmatpush1.msra.mxu0 %v20
    %758 = vmatprep.subr.mxu0 0.0
    %759 = vmatpush1.msra.mxu0 %v21
    %760 = vmatprep.subr.mxu0 0.0
    %761 = vmatpush1.msra.mxu0 %v22
    %762 = vmatprep.subr.mxu0 0.0
    %763 = vmatpush1.msra.mxu0 0.0
    %764 = vmatprep.subr.mxu0 0.0
    %765 = vmatpush1.msra.mxu0 0.0
    %766 = vmatprep.subr.mxu0 0.0
    %767 = vmatpush1.msra.mxu0 0.0
    %768 = vmatprep.subr.mxu0 0.0
    %769 = vmatpush1.msra.mxu0 0.0
    %770 = vmatprep.subr.mxu0 0.0
    %771 = vmatpush1.msra.mxu0 0.0
    %772 = vmatprep.subr.mxu0 0.0
    %773 = vmatpush1.msra.mxu0 0.0
    %774 = vmatprep.subr.mxu0 0.0
    %775 = vmatpush1.msra.mxu0 0.0
    %776 = vmatprep.subr.mxu0 0.0
    %777 = vmatpush1.msra.mxu0 0.0
    %778 = vmatprep.subr.mxu0 0.0
    %779 = vmatpush1.msra.mxu0 0.0
    %780 = vmatprep.subr.mxu0 0.0
    %781 = vmatpush1.msra.mxu0 0.0
    %782 = vmatprep.subr.mxu0 0.0
    %783 = vmatpush1.msra.mxu0 0.0
    %784 = vmatprep.subr.mxu0 0.0
    %785 = vmatpush1.msra.mxu0 0.0
    %786 = vmatprep.subr.mxu0 0.0
    %787 = vmatpush1.msra.mxu0 0.0
    %788 = vmatprep.subr.mxu0 0.0
    %789 = vmatpush1.msra.mxu0 0.0
    %790 = vmatprep.subr.mxu0 0.0
    %791 = vmatpush1.msra.mxu0 0.0
    %792 = vmatprep.subr.mxu0 0.0
    %793 = vmatpush1.msra.mxu0 0.0
    %794 = vmatprep.subr.mxu0 0.0
    %795 = vmatpush1.msra.mxu0 0.0
    %796 = vmatprep.subr.mxu0 0.0
    %797 = vmatpush1.msra.mxu0 0.0
    %798 = vmatprep.subr.mxu0 0.0
    %799 = vmatpush1.msra.mxu0 0.0
    %800 = vmatprep.subr.mxu0 0.0
    %801 = vmatpush1.msra.mxu0 0.0
    %802 = vmatprep.subr.mxu0 0.0
    %803 = vmatpush1.msra.mxu0 0.0
    %804 = vmatprep.subr.mxu0 0.0
    %805 = vmatpush1.msra.mxu0 0.0
    %806 = vmatprep.subr.mxu0 0.0
    %807 = vmatpush1.msra.mxu0 0.0
    %808 = vmatprep.subr.mxu0 0.0
    %809 = vmatpush1.msra.mxu0 0.0
    %810 = vmatprep.subr.mxu0 0.0
    %811 = vmatpush1.msra.mxu0 0.0
    %812 = vmatprep.subr.mxu0 0.0
    %813 = vmatpush1.msra.mxu0 0.0
    %814 = vmatprep.subr.mxu0 0.0
    %815 = vmatpush1.msra.mxu0 0.0
    %816 = vmatprep.subr.mxu0 0.0
    %817 = vmatpush1.msra.mxu0 0.0
    %818 = vmatprep.mubr.f32.mxu0 0.0
    %819 = vmatmul.mubr.f32.gmra.mrb[0].mxu0 %v603
    %v820 = vpop.f32.mrb[0].mxu0
    %v821 = vadd.f32 0.0, %v820
    %v822 = vpop.f32.mrb[0].mxu0
    %823 = vdwg.mxu0
    %v824 = vadd.f32 %v196, %v821
    %v825 = vtanh.pop %v824
    %v827 = vsel %vm224, %v825, 0
    %829 = vmatprep.subr.mxu0 0.0
    %830 = vmatpush1.msra.mxu0 %v23
    %831 = vmatprep.subr.mxu0 0.0
    %832 = vmatpush1.msra.mxu0 %v24
    %833 = vmatprep.subr.mxu0 0.0
    %834 = vmatpush1.msra.mxu0 %v25
    %835 = vmatprep.subr.mxu0 0.0
    %836 = vmatpush1.msra.mxu0 %v26
    %837 = vmatprep.subr.mxu0 0.0
    %838 = vmatpush1.msra.mxu0 0.0
    %839 = vmatprep.subr.mxu0 0.0
    %840 = vmatpush1.msra.mxu0 0.0
    %841 = vmatprep.subr.mxu0 0.0
    %842 = vmatpush1.msra.mxu0 0.0
    %843 = vmatprep.subr.mxu0 0.0
    %844 = vmatpush1.msra.mxu0 0.0
    %845 = vmatprep.subr.mxu0 0.0
    %846 = vmatpush1.msra.mxu0 0.0
    %847 = vmatprep.subr.mxu0 0.0
    %848 = vmatpush1.msra.mxu0 0.0
    %849 = vmatprep.subr.mxu0 0.0
    %850 = vmatpush1.msra.mxu0 0.0
    %851 = vmatprep.subr.mxu0 0.0
    %852 = vmatpush1.msra.mxu0 0.0
    %853 = vmatprep.subr.mxu0 0.0
    %854 = vmatpush1.msra.mxu0 0.0
    %855 = vmatprep.subr.mxu0 0.0
    %856 = vmatpush1.msra.mxu0 0.0
    %857 = vmatprep.subr.mxu0 0.0
    %858 = vmatpush1.msra.mxu0 0.0
    %859 = vmatprep.subr.mxu0 0.0
    %860 = vmatpush1.msra.mxu0 0.0
    %861 = vmatprep.subr.mxu0 0.0
    %862 = vmatpush1.msra.mxu0 0.0
    %863 = vmatprep.subr.mxu0 0.0
    %864 = vmatpush1.msra.mxu0 0.0
    %865 = vmatprep.subr.mxu0 0.0
    %866 = vmatpush1.msra.mxu0 0.0
    %867 = vmatprep.subr.mxu0 0.0
    %868 = vmatpush1.msra.mxu0 0.0
    %869 = vmatprep.subr.mxu0 0.0
    %870 = vmatpush1.msra.mxu0 0.0
    %871 = vmatprep.subr.mxu0 0.0
    %872 = vmatpush1.msra.mxu0 0.0
    %873 = vmatprep.subr.mxu0 0.0
    %874 = vmatpush1.msra.mxu0 0.0
    %875 = vmatprep.subr.mxu0 0.0
    %876 = vmatpush1.msra.mxu0 0.0
    %877 = vmatprep.subr.mxu0 0.0
    %878 = vmatpush1.msra.mxu0 0.0
    %879 = vmatprep.subr.mxu0 0.0
    %880 = vmatpush1.msra.mxu0 0.0
    %881 = vmatprep.subr.mxu0 0.0
    %882 = vmatpush1.msra.mxu0 0.0
    %883 = vmatprep.subr.mxu0 0.0
    %884 = vmatpush1.msra.mxu0 0.0
    %885 = vmatprep.subr.mxu0 0.0
    %886 = vmatpush1.msra.mxu0 0.0
    %887 = vmatprep.subr.mxu0 0.0
    %888 = vmatpush1.msra.mxu0 0.0
    %889 = vmatprep.subr.mxu0 0.0
    %890 = vmatpush1.msra.mxu0 0.0
    %891 = vmatprep.subr.mxu0 0.0
    %892 = vmatpush1.msra.mxu0 0.0
    %893 = vmatprep.mubr.f32.mxu0 0.0
    %894 = vmatmul.mubr.f32.gmra.mrb[0].mxu0 %v827
    %v895 = vpop.f32.mrb[0].mxu0
    %v896 = vadd.f32 %v751, %v895
    %v897 = vpop.f32.mrb[0].mxu0
    %898 = vdwg.mxu0
    %v899 = vadd.f32 %v896, %v446
    %v900 = vtanh.pop %v899
    %v901 = vmul.f32 %v900, %v452
    %v902 = vsel %vm224, %v901, 0.0
    %903 = vadd.xlane.f32.xlu0 %v902
    %v904 = vpop.xlane.xlu0 %903
    %v906 = vsel %vm224, %v900, 0
    %908 = vmatprep.subr.mxu0 0.0
    %909 = vmatpush1.msra.mxu0 %v27
    %910 = vmatprep.subr.mxu0 0.0
    %911 = vmatpush1.msra.mxu0 %v28
    %912 = vmatprep.subr.mxu0 0.0
    %913 = vmatpush1.msra.mxu0 %v29
    %914 = vmatprep.subr.mxu0 0.0
    %915 = vmatpush1.msra.mxu0 %v30
    %916 = vmatprep.subr.mxu0 0.0
    %917 = vmatpush1.msra.mxu0 0.0
    %918 = vmatprep.subr.mxu0 0.0
    %919 = vmatpush1.msra.mxu0 0.0
    %920 = vmatprep.subr.mxu0 0.0
    %921 = vmatpush1.msra.mxu0 0.0
    %922 = vmatprep.subr.mxu0 0.0
    %923 = vmatpush1.msra.mxu0 0.0
    %924 = vmatprep.subr.mxu0 0.0
    %925 = vmatpush1.msra.mxu0 0.0
    %926 = vmatprep.subr.mxu0 0.0
    %927 = vmatpush1.msra.mxu0 0.0
    %928 = vmatprep.subr.mxu0 0.0
    %929 = vmatpush1.msra.mxu0 0.0
    %930 = vmatprep.subr.mxu0 0.0
    %931 = vmatpush1.msra.mxu0 0.0
    %932 = vmatprep.subr.mxu0 0.0
    %933 = vmatpush1.msra.mxu0 0.0
    %934 = vmatprep.subr.mxu0 0.0
    %935 = vmatpush1.msra.mxu0 0.0
    %936 = vmatprep.subr.mxu0 0.0
    %937 = vmatpush1.msra.mxu0 0.0
    %938 = vmatprep.subr.mxu0 0.0
    %939 = vmatpush1.msra.mxu0 0.0
    %940 = vmatprep.subr.mxu0 0.0
    %941 = vmatpush1.msra.mxu0 0.0
    %942 = vmatprep.subr.mxu0 0.0
    %943 = vmatpush1.msra.mxu0 0.0
    %944 = vmatprep.subr.mxu0 0.0
    %945 = vmatpush1.msra.mxu0 0.0
    %946 = vmatprep.subr.mxu0 0.0
    %947 = vmatpush1.msra.mxu0 0.0
    %948 = vmatprep.subr.mxu0 0.0
    %949 = vmatpush1.msra.mxu0 0.0
    %950 = vmatprep.subr.mxu0 0.0
    %951 = vmatpush1.msra.mxu0 0.0
    %952 = vmatprep.subr.mxu0 0.0
    %953 = vmatpush1.msra.mxu0 0.0
    %954 = vmatprep.subr.mxu0 0.0
    %955 = vmatpush1.msra.mxu0 0.0
    %956 = vmatprep.subr.mxu0 0.0
    %957 = vmatpush1.msra.mxu0 0.0
    %958 = vmatprep.subr.mxu0 0.0
    %959 = vmatpush1.msra.mxu0 0.0
    %960 = vmatprep.subr.mxu0 0.0
    %961 = vmatpush1.msra.mxu0 0.0
    %962 = vmatprep.subr.mxu0 0.0
    %963 = vmatpush1.msra.mxu0 0.0
    %964 = vmatprep.subr.mxu0 0.0
    %965 = vmatpush1.msra.mxu0 0.0
    %966 = vmatprep.subr.mxu0 0.0
    %967 = vmatpush1.msra.mxu0 0.0
    %968 = vmatprep.subr.mxu0 0.0
    %969 = vmatpush1.msra.mxu0 0.0
    %970 = vmatprep.subr.mxu0 0.0
    %971 = vmatpush1.msra.mxu0 0.0
    %972 = vmatprep.mubr.f32.mxu0 0.0
    %973 = vmatmul.mubr.f32.gmra.mrb[0].mxu0 %v906
    %v974 = vpop.f32.mrb[0].mxu0
    %v975 = vadd.f32 0.0, %v974
    %v976 = vpop.f32.mrb[0].mxu0
    %977 = vdwg.mxu0
    %978 = vmatprep.subr.mxu0 0.0
    %979 = vmatpush1.msra.mxu0 %v19
    %980 = vmatprep.subr.mxu0 0.0
    %981 = vmatpush1.msra.mxu0 %v20
    %982 = vmatprep.subr.mxu0 0.0
    %983 = vmatpush1.msra.mxu0 %v21
    %984 = vmatprep.subr.mxu0 0.0
    %985 = vmatpush1.msra.mxu0 %v22
    %986 = vmatprep.subr.mxu0 0.0
    %987 = vmatpush1.msra.mxu0 0.0
    %988 = vmatprep.subr.mxu0 0.0
    %989 = vmatpush1.msra.mxu0 0.0
    %990 = vmatprep.subr.mxu0 0.0
    %991 = vmatpush1.msra.mxu0 0.0
    %992 = vmatprep.subr.mxu0 0.0
    %993 = vmatpush1.msra.mxu0 0.0
    %994 = vmatprep.subr.mxu0 0.0
    %995 = vmatpush1.msra.mxu0 0.0
    %996 = vmatprep.subr.mxu0 0.0
    %997 = vmatpush1.msra.mxu0 0.0
    %998 = vmatprep.subr.mxu0 0.0
    %999 = vmatpush1.msra.mxu0 0.0
    %1000 = vmatprep.subr.mxu0 0.0
    %1001 = vmatpush1.msra.mxu0 0.0
    %1002 = vmatprep.subr.mxu0 0.0
    %1003 = vmatpush1.msra.mxu0 0.0
    %1004 = vmatprep.subr.mxu0 0.0
    %1005 = vmatpush1.msra.mxu0 0.0
    %1006 = vmatprep.subr.mxu0 0.0
    %1007 = vmatpush1.msra.mxu0 0.0
    %1008 = vmatprep.subr.mxu0 0.0
    %1009 = vmatpush1.msra.mxu0 0.0
    %1010 = vmatprep.subr.mxu0 0.0
    %1011 = vmatpush1.msra.mxu0 0.0
    %1012 = vmatprep.subr.mxu0 0.0
    %1013 = vmatpush1.msra.mxu0 0.0
    %1014 = vmatprep.subr.mxu0 0.0
    %1015 = vmatpush1.msra.mxu0 0.0
    %1016 = vmatprep.subr.mxu0 0.0
    %1017 = vmatpush1.msra.mxu0 0.0
    %1018 = vmatprep.subr.mxu0 0.0
    %1019 = vmatpush1.msra.mxu0 0.0
    %1020 = vmatprep.subr.mxu0 0.0
    %1021 = vmatpush1.msra.mxu0 0.0
    %1022 = vmatprep.subr.mxu0 0.0
    %1023 = vmatpush1.msra.mxu0 0.0
    %1024 = vmatprep.subr.mxu0 0.0
    %1025 = vmatpush1.msra.mxu0 0.0
    %1026 = vmatprep.subr.mxu0 0.0
    %1027 = vmatpush1.msra.mxu0 0.0
    %1028 = vmatprep.subr.mxu0 0.0
    %1029 = vmatpush1.msra.mxu0 0.0
    %1030 = vmatprep.subr.mxu0 0.0
    %1031 = vmatpush1.msra.mxu0 0.0
    %1032 = vmatprep.subr.mxu0 0.0
    %1033 = vmatpush1.msra.mxu0 0.0
    %1034 = vmatprep.subr.mxu0 0.0
    %1035 = vmatpush1.msra.mxu0 0.0
    %1036 = vmatprep.subr.mxu0 0.0
    %1037 = vmatpush1.msra.mxu0 0.0
    %1038 = vmatprep.subr.mxu0 0.0
    %1039 = vmatpush1.msra.mxu0 0.0
    %1040 = vmatprep.subr.mxu0 0.0
    %1041 = vmatpush1.msra.mxu0 0.0
    %1042 = vmatprep.mubr.f32.mxu0 0.0
    %1043 = vmatmul.mubr.f32.gmra.mrb[0].mxu0 %v827
    %v1044 = vpop.f32.mrb[0].mxu0
    %v1045 = vadd.f32 0.0, %v1044
    %v1046 = vpop.f32.mrb[0].mxu0
    %1047 = vdwg.mxu0
    %v1048 = vadd.f32 %v201, %v1045
    %v1049 = vtanh.pop %v1048
    %v1051 = vsel %vm224, %v1049, 0
    %1053 = vmatprep.subr.mxu0 0.0
    %1054 = vmatpush1.msra.mxu0 %v23
    %1055 = vmatprep.subr.mxu0 0.0
    %1056 = vmatpush1.msra.mxu0 %v24
    %1057 = vmatprep.subr.mxu0 0.0
    %1058 = vmatpush1.msra.mxu0 %v25
    %1059 = vmatprep.subr.mxu0 0.0
    %1060 = vmatpush1.msra.mxu0 %v26
    %1061 = vmatprep.subr.mxu0 0.0
    %1062 = vmatpush1.msra.mxu0 0.0
    %1063 = vmatprep.subr.mxu0 0.0
    %1064 = vmatpush1.msra.mxu0 0.0
    %1065 = vmatprep.subr.mxu0 0.0
    %1066 = vmatpush1.msra.mxu0 0.0
    %1067 = vmatprep.subr.mxu0 0.0
    %1068 = vmatpush1.msra.mxu0 0.0
    %1069 = vmatprep.subr.mxu0 0.0
    %1070 = vmatpush1.msra.mxu0 0.0
    %1071 = vmatprep.subr.mxu0 0.0
    %1072 = vmatpush1.msra.mxu0 0.0
    %1073 = vmatprep.subr.mxu0 0.0
    %1074 = vmatpush1.msra.mxu0 0.0
    %1075 = vmatprep.subr.mxu0 0.0
    %1076 = vmatpush1.msra.mxu0 0.0
    %1077 = vmatprep.subr.mxu0 0.0
    %1078 = vmatpush1.msra.mxu0 0.0
    %1079 = vmatprep.subr.mxu0 0.0
    %1080 = vmatpush1.msra.mxu0 0.0
    %1081 = vmatprep.subr.mxu0 0.0
    %1082 = vmatpush1.msra.mxu0 0.0
    %1083 = vmatprep.subr.mxu0 0.0
    %1084 = vmatpush1.msra.mxu0 0.0
    %1085 = vmatprep.subr.mxu0 0.0
    %1086 = vmatpush1.msra.mxu0 0.0
    %1087 = vmatprep.subr.mxu0 0.0
    %1088 = vmatpush1.msra.mxu0 0.0
    %1089 = vmatprep.subr.mxu0 0.0
    %1090 = vmatpush1.msra.mxu0 0.0
    %1091 = vmatprep.subr.mxu0 0.0
    %1092 = vmatpush1.msra.mxu0 0.0
    %1093 = vmatprep.subr.mxu0 0.0
    %1094 = vmatpush1.msra.mxu0 0.0
    %1095 = vmatprep.subr.mxu0 0.0
    %1096 = vmatpush1.msra.mxu0 0.0
    %1097 = vmatprep.subr.mxu0 0.0
    %1098 = vmatpush1.msra.mxu0 0.0
    %1099 = vmatprep.subr.mxu0 0.0
    %1100 = vmatpush1.msra.mxu0 0.0
    %1101 = vmatprep.subr.mxu0 0.0
    %1102 = vmatpush1.msra.mxu0 0.0
    %1103 = vmatprep.subr.mxu0 0.0
    %1104 = vmatpush1.msra.mxu0 0.0
    %1105 = vmatprep.subr.mxu0 0.0
    %1106 = vmatpush1.msra.mxu0 0.0
    %1107 = vmatprep.subr.mxu0 0.0
    %1108 = vmatpush1.msra.mxu0 0.0
    %1109 = vmatprep.subr.mxu0 0.0
    %1110 = vmatpush1.msra.mxu0 0.0
    %1111 = vmatprep.subr.mxu0 0.0
    %1112 = vmatpush1.msra.mxu0 0.0
    %1113 = vmatprep.subr.mxu0 0.0
    %1114 = vmatpush1.msra.mxu0 0.0
    %1115 = vmatprep.subr.mxu0 0.0
    %1116 = vmatpush1.msra.mxu0 0.0
    %1117 = vmatprep.mubr.f32.mxu0 0.0
    %1118 = vmatmul.mubr.f32.gmra.mrb[0].mxu0 %v1051
    %v1119 = vpop.f32.mrb[0].mxu0
    %v1120 = vadd.f32 %v975, %v1119
    %v1121 = vpop.f32.mrb[0].mxu0
    %1122 = vdwg.mxu0
    %v1123 = vadd.f32 %v1120, %v446
    %v1124 = vtanh.pop %v1123
    %v1125 = vmul.f32 %v1124, %v452
    %v1126 = vsel %vm224, %v1125, 0.0
    %1127 = vadd.xlane.f32.xlu0 %v1126
    %v1128 = vpop.xlane.xlu0 %1127
    %v1130 = vsel %vm224, %v1124, 0
    %1132 = vmatprep.subr.mxu0 0.0
    %1133 = vmatpush1.msra.mxu0 %v27
    %1134 = vmatprep.subr.mxu0 0.0
    %1135 = vmatpush1.msra.mxu0 %v28
    %1136 = vmatprep.subr.mxu0 0.0
    %1137 = vmatpush1.msra.mxu0 %v29
    %1138 = vmatprep.subr.mxu0 0.0
    %1139 = vmatpush1.msra.mxu0 %v30
    %1140 = vmatprep.subr.mxu0 0.0
    %1141 = vmatpush1.msra.mxu0 0.0
    %1142 = vmatprep.subr.mxu0 0.0
    %1143 = vmatpush1.msra.mxu0 0.0
    %1144 = vmatprep.subr.mxu0 0.0
    %1145 = vmatpush1.msra.mxu0 0.0
    %1146 = vmatprep.subr.mxu0 0.0
    %1147 = vmatpush1.msra.mxu0 0.0
    %1148 = vmatprep.subr.mxu0 0.0
    %1149 = vmatpush1.msra.mxu0 0.0
    %1150 = vmatprep.subr.mxu0 0.0
    %1151 = vmatpush1.msra.mxu0 0.0
    %1152 = vmatprep.subr.mxu0 0.0
    %1153 = vmatpush1.msra.mxu0 0.0
    %1154 = vmatprep.subr.mxu0 0.0
    %1155 = vmatpush1.msra.mxu0 0.0
    %1156 = vmatprep.subr.mxu0 0.0
    %1157 = vmatpush1.msra.mxu0 0.0
    %1158 = vmatprep.subr.mxu0 0.0
    %1159 = vmatpush1.msra.mxu0 0.0
    %1160 = vmatprep.subr.mxu0 0.0
    %1161 = vmatpush1.msra.mxu0 0.0
    %1162 = vmatprep.subr.mxu0 0.0
    %1163 = vmatpush1.msra.mxu0 0.0
    %1164 = vmatprep.subr.mxu0 0.0
    %1165 = vmatpush1.msra.mxu0 0.0
    %1166 = vmatprep.subr.mxu0 0.0
    %1167 = vmatpush1.msra.mxu0 0.0
    %1168 = vmatprep.subr.mxu0 0.0
    %1169 = vmatpush1.msra.mxu0 0.0
    %1170 = vmatprep.subr.mxu0 0.0
    %1171 = vmatpush1.msra.mxu0 0.0
    %1172 = vmatprep.subr.mxu0 0.0
    %1173 = vmatpush1.msra.mxu0 0.0
    %1174 = vmatprep.subr.mxu0 0.0
    %1175 = vmatpush1.msra.mxu0 0.0
    %1176 = vmatprep.subr.mxu0 0.0
    %1177 = vmatpush1.msra.mxu0 0.0
    %1178 = vmatprep.subr.mxu0 0.0
    %1179 = vmatpush1.msra.mxu0 0.0
    %1180 = vmatprep.subr.mxu0 0.0
    %1181 = vmatpush1.msra.mxu0 0.0
    %1182 = vmatprep.subr.mxu0 0.0
    %1183 = vmatpush1.msra.mxu0 0.0
    %1184 = vmatprep.subr.mxu0 0.0
    %1185 = vmatpush1.msra.mxu0 0.0
    %1186 = vmatprep.subr.mxu0 0.0
    %1187 = vmatpush1.msra.mxu0 0.0
    %1188 = vmatprep.subr.mxu0 0.0
    %1189 = vmatpush1.msra.mxu0 0.0
    %1190 = vmatprep.subr.mxu0 0.0
    %1191 = vmatpush1.msra.mxu0 0.0
    %1192 = vmatprep.subr.mxu0 0.0
    %1193 = vmatpush1.msra.mxu0 0.0
    %1194 = vmatprep.subr.mxu0 0.0
    %1195 = vmatpush1.msra.mxu0 0.0
    %1196 = vmatprep.mubr.f32.mxu0 0.0
    %1197 = vmatmul.mubr.f32.gmra.mrb[0].mxu0 %v1130
    %v1198 = vpop.f32.mrb[0].mxu0
    %v1199 = vadd.f32 0.0, %v1198
    %v1200 = vpop.f32.mrb[0].mxu0
    %1201 = vdwg.mxu0
    %1202 = vmatprep.subr.mxu0 0.0
    %1203 = vmatpush1.msra.mxu0 %v19
    %1204 = vmatprep.subr.mxu0 0.0
    %1205 = vmatpush1.msra.mxu0 %v20
    %1206 = vmatprep.subr.mxu0 0.0
    %1207 = vmatpush1.msra.mxu0 %v21
    %1208 = vmatprep.subr.mxu0 0.0
    %1209 = vmatpush1.msra.mxu0 %v22
    %1210 = vmatprep.subr.mxu0 0.0
    %1211 = vmatpush1.msra.mxu0 0.0
    %1212 = vmatprep.subr.mxu0 0.0
    %1213 = vmatpush1.msra.mxu0 0.0
    %1214 = vmatprep.subr.mxu0 0.0
    %1215 = vmatpush1.msra.mxu0 0.0
    %1216 = vmatprep.subr.mxu0 0.0
    %1217 = vmatpush1.msra.mxu0 0.0
    %1218 = vmatprep.subr.mxu0 0.0
    %1219 = vmatpush1.msra.mxu0 0.0
    %1220 = vmatprep.subr.mxu0 0.0
    %1221 = vmatpush1.msra.mxu0 0.0
    %1222 = vmatprep.subr.mxu0 0.0
    %1223 = vmatpush1.msra.mxu0 0.0
    %1224 = vmatprep.subr.mxu0 0.0
    %1225 = vmatpush1.msra.mxu0 0.0
    %1226 = vmatprep.subr.mxu0 0.0
    %1227 = vmatpush1.msra.mxu0 0.0
    %1228 = vmatprep.subr.mxu0 0.0
    %1229 = vmatpush1.msra.mxu0 0.0
    %1230 = vmatprep.subr.mxu0 0.0
    %1231 = vmatpush1.msra.mxu0 0.0
    %1232 = vmatprep.subr.mxu0 0.0
    %1233 = vmatpush1.msra.mxu0 0.0
    %1234 = vmatprep.subr.mxu0 0.0
    %1235 = vmatpush1.msra.mxu0 0.0
    %1236 = vmatprep.subr.mxu0 0.0
    %1237 = vmatpush1.msra.mxu0 0.0
    %1238 = vmatprep.subr.mxu0 0.0
    %1239 = vmatpush1.msra.mxu0 0.0
    %1240 = vmatprep.subr.mxu0 0.0
    %1241 = vmatpush1.msra.mxu0 0.0
    %1242 = vmatprep.subr.mxu0 0.0
    %1243 = vmatpush1.msra.mxu0 0.0
    %1244 = vmatprep.subr.mxu0 0.0
    %1245 = vmatpush1.msra.mxu0 0.0
    %1246 = vmatprep.subr.mxu0 0.0
    %1247 = vmatpush1.msra.mxu0 0.0
    %1248 = vmatprep.subr.mxu0 0.0
    %1249 = vmatpush1.msra.mxu0 0.0
    %1250 = vmatprep.subr.mxu0 0.0
    %1251 = vmatpush1.msra.mxu0 0.0
    %1252 = vmatprep.subr.mxu0 0.0
    %1253 = vmatpush1.msra.mxu0 0.0
    %1254 = vmatprep.subr.mxu0 0.0
    %1255 = vmatpush1.msra.mxu0 0.0
    %1256 = vmatprep.subr.mxu0 0.0
    %1257 = vmatpush1.msra.mxu0 0.0
    %1258 = vmatprep.subr.mxu0 0.0
    %1259 = vmatpush1.msra.mxu0 0.0
    %1260 = vmatprep.subr.mxu0 0.0
    %1261 = vmatpush1.msra.mxu0 0.0
    %1262 = vmatprep.subr.mxu0 0.0
    %1263 = vmatpush1.msra.mxu0 0.0
    %1264 = vmatprep.subr.mxu0 0.0
    %1265 = vmatpush1.msra.mxu0 0.0
    %1266 = vmatprep.mubr.f32.mxu0 0.0
    %1267 = vmatmul.mubr.f32.gmra.mrb[0].mxu0 %v1051
    %v1268 = vpop.f32.mrb[0].mxu0
    %v1269 = vadd.f32 0.0, %v1268
    %v1270 = vpop.f32.mrb[0].mxu0
    %1271 = vdwg.mxu0
    %v1272 = vadd.f32 %v206, %v1269
    %v1273 = vtanh.pop %v1272
    %v1275 = vsel %vm224, %v1273, 0
    %1277 = vmatprep.subr.mxu0 0.0
    %1278 = vmatpush1.msra.mxu0 %v23
    %1279 = vmatprep.subr.mxu0 0.0
    %1280 = vmatpush1.msra.mxu0 %v24
    %1281 = vmatprep.subr.mxu0 0.0
    %1282 = vmatpush1.msra.mxu0 %v25
    %1283 = vmatprep.subr.mxu0 0.0
    %1284 = vmatpush1.msra.mxu0 %v26
    %1285 = vmatprep.subr.mxu0 0.0
    %1286 = vmatpush1.msra.mxu0 0.0
    %1287 = vmatprep.subr.mxu0 0.0
    %1288 = vmatpush1.msra.mxu0 0.0
    %1289 = vmatprep.subr.mxu0 0.0
    %1290 = vmatpush1.msra.mxu0 0.0
    %1291 = vmatprep.subr.mxu0 0.0
    %1292 = vmatpush1.msra.mxu0 0.0
    %1293 = vmatprep.subr.mxu0 0.0
    %1294 = vmatpush1.msra.mxu0 0.0
    %1295 = vmatprep.subr.mxu0 0.0
    %1296 = vmatpush1.msra.mxu0 0.0
    %1297 = vmatprep.subr.mxu0 0.0
    %1298 = vmatpush1.msra.mxu0 0.0
    %1299 = vmatprep.subr.mxu0 0.0
    %1300 = vmatpush1.msra.mxu0 0.0
    %1301 = vmatprep.subr.mxu0 0.0
    %1302 = vmatpush1.msra.mxu0 0.0
    %1303 = vmatprep.subr.mxu0 0.0
    %1304 = vmatpush1.msra.mxu0 0.0
    %1305 = vmatprep.subr.mxu0 0.0
    %1306 = vmatpush1.msra.mxu0 0.0
    %1307 = vmatprep.subr.mxu0 0.0
    %1308 = vmatpush1.msra.mxu0 0.0
    %1309 = vmatprep.subr.mxu0 0.0
    %1310 = vmatpush1.msra.mxu0 0.0
    %1311 = vmatprep.subr.mxu0 0.0
    %1312 = vmatpush1.msra.mxu0 0.0
    %1313 = vmatprep.subr.mxu0 0.0
    %1314 = vmatpush1.msra.mxu0 0.0
    %1315 = vmatprep.subr.mxu0 0.0
    %1316 = vmatpush1.msra.mxu0 0.0
    %1317 = vmatprep.subr.mxu0 0.0
    %1318 = vmatpush1.msra.mxu0 0.0
    %1319 = vmatprep.subr.mxu0 0.0
    %1320 = vmatpush1.msra.mxu0 0.0
    %1321 = vmatprep.subr.mxu0 0.0
    %1322 = vmatpush1.msra.mxu0 0.0
    %1323 = vmatprep.subr.mxu0 0.0
    %1324 = vmatpush1.msra.mxu0 0.0
    %1325 = vmatprep.subr.mxu0 0.0
    %1326 = vmatpush1.msra.mxu0 0.0
    %1327 = vmatprep.subr.mxu0 0.0
    %1328 = vmatpush1.msra.mxu0 0.0
    %1329 = vmatprep.subr.mxu0 0.0
    %1330 = vmatpush1.msra.mxu0 0.0
    %1331 = vmatprep.subr.mxu0 0.0
    %1332 = vmatpush1.msra.mxu0 0.0
    %1333 = vmatprep.subr.mxu0 0.0
    %1334 = vmatpush1.msra.mxu0 0.0
    %1335 = vmatprep.subr.mxu0 0.0
    %1336 = vmatpush1.msra.mxu0 0.0
    %1337 = vmatprep.subr.mxu0 0.0
    %1338 = vmatpush1.msra.mxu0 0.0
    %1339 = vmatprep.subr.mxu0 0.0
    %1340 = vmatpush1.msra.mxu0 0.0
    %1341 = vmatprep.mubr.f32.mxu0 0.0
    %1342 = vmatmul.mubr.f32.gmra.mrb[0].mxu0 %v1275
    %v1343 = vpop.f32.mrb[0].mxu0
    %v1344 = vadd.f32 %v1199, %v1343
    %v1345 = vpop.f32.mrb[0].mxu0
    %1346 = vdwg.mxu0
    %v1347 = vadd.f32 %v1344, %v446
    %v1348 = vtanh.pop %v1347
    %v1349 = vmul.f32 %v1348, %v452
    %v1350 = vsel %vm224, %v1349, 0.0
    %1351 = vadd.xlane.f32.xlu0 %v1350
    %v1352 = vpop.xlane.xlu0 %1351
    %v1354 = vsel %vm224, %v1348, 0
    %1356 = vmatprep.subr.mxu0 0.0
    %1357 = vmatpush1.msra.mxu0 %v27
    %1358 = vmatprep.subr.mxu0 0.0
    %1359 = vmatpush1.msra.mxu0 %v28
    %1360 = vmatprep.subr.mxu0 0.0
    %1361 = vmatpush1.msra.mxu0 %v29
    %1362 = vmatprep.subr.mxu0 0.0
    %1363 = vmatpush1.msra.mxu0 %v30
    %1364 = vmatprep.subr.mxu0 0.0
    %1365 = vmatpush1.msra.mxu0 0.0
    %1366 = vmatprep.subr.mxu0 0.0
    %1367 = vmatpush1.msra.mxu0 0.0
    %1368 = vmatprep.subr.mxu0 0.0
    %1369 = vmatpush1.msra.mxu0 0.0
    %1370 = vmatprep.subr.mxu0 0.0
    %1371 = vmatpush1.msra.mxu0 0.0
    %1372 = vmatprep.subr.mxu0 0.0
    %1373 = vmatpush1.msra.mxu0 0.0
    %1374 = vmatprep.subr.mxu0 0.0
    %1375 = vmatpush1.msra.mxu0 0.0
    %1376 = vmatprep.subr.mxu0 0.0
    %1377 = vmatpush1.msra.mxu0 0.0
    %1378 = vmatprep.subr.mxu0 0.0
    %1379 = vmatpush1.msra.mxu0 0.0
    %1380 = vmatprep.subr.mxu0 0.0
    %1381 = vmatpush1.msra.mxu0 0.0
    %1382 = vmatprep.subr.mxu0 0.0
    %1383 = vmatpush1.msra.mxu0 0.0
    %1384 = vmatprep.subr.mxu0 0.0
    %1385 = vmatpush1.msra.mxu0 0.0
    %1386 = vmatprep.subr.mxu0 0.0
    %1387 = vmatpush1.msra.mxu0 0.0
    %1388 = vmatprep.subr.mxu0 0.0
    %1389 = vmatpush1.msra.mxu0 0.0
    %1390 = vmatprep.subr.mxu0 0.0
    %1391 = vmatpush1.msra.mxu0 0.0
    %1392 = vmatprep.subr.mxu0 0.0
    %1393 = vmatpush1.msra.mxu0 0.0
    %1394 = vmatprep.subr.mxu0 0.0
    %1395 = vmatpush1.msra.mxu0 0.0
    %1396 = vmatprep.subr.mxu0 0.0
    %1397 = vmatpush1.msra.mxu0 0.0
    %1398 = vmatprep.subr.mxu0 0.0
    %1399 = vmatpush1.msra.mxu0 0.0
    %1400 = vmatprep.subr.mxu0 0.0
    %1401 = vmatpush1.msra.mxu0 0.0
    %1402 = vmatprep.subr.mxu0 0.0
    %1403 = vmatpush1.msra.mxu0 0.0
    %1404 = vmatprep.subr.mxu0 0.0
    %1405 = vmatpush1.msra.mxu0 0.0
    %1406 = vmatprep.subr.mxu0 0.0
    %1407 = vmatpush1.msra.mxu0 0.0
    %1408 = vmatprep.subr.mxu0 0.0
    %1409 = vmatpush1.msra.mxu0 0.0
    %1410 = vmatprep.subr.mxu0 0.0
    %1411 = vmatpush1.msra.mxu0 0.0
    %1412 = vmatprep.subr.mxu0 0.0
    %1413 = vmatpush1.msra.mxu0 0.0
    %1414 = vmatprep.subr.mxu0 0.0
    %1415 = vmatpush1.msra.mxu0 0.0
    %1416 = vmatprep.subr.mxu0 0.0
    %1417 = vmatpush1.msra.mxu0 0.0
    %1418 = vmatprep.subr.mxu0 0.0
    %1419 = vmatpush1.msra.mxu0 0.0
    %1420 = vmatprep.mubr.f32.mxu0 0.0
    %1421 = vmatmul.mubr.f32.gmra.mrb[0].mxu0 %v1354
    %v1422 = vpop.f32.mrb[0].mxu0
    %v1423 = vadd.f32 0.0, %v1422
    %v1424 = vpop.f32.mrb[0].mxu0
    %1425 = vdwg.mxu0
    %1426 = vmatprep.subr.mxu0 0.0
    %1427 = vmatpush1.msra.mxu0 %v19
    %1428 = vmatprep.subr.mxu0 0.0
    %1429 = vmatpush1.msra.mxu0 %v20
    %1430 = vmatprep.subr.mxu0 0.0
    %1431 = vmatpush1.msra.mxu0 %v21
    %1432 = vmatprep.subr.mxu0 0.0
    %1433 = vmatpush1.msra.mxu0 %v22
    %1434 = vmatprep.subr.mxu0 0.0
    %1435 = vmatpush1.msra.mxu0 0.0
    %1436 = vmatprep.subr.mxu0 0.0
    %1437 = vmatpush1.msra.mxu0 0.0
    %1438 = vmatprep.subr.mxu0 0.0
    %1439 = vmatpush1.msra.mxu0 0.0
    %1440 = vmatprep.subr.mxu0 0.0
    %1441 = vmatpush1.msra.mxu0 0.0
    %1442 = vmatprep.subr.mxu0 0.0
    %1443 = vmatpush1.msra.mxu0 0.0
    %1444 = vmatprep.subr.mxu0 0.0
    %1445 = vmatpush1.msra.mxu0 0.0
    %1446 = vmatprep.subr.mxu0 0.0
    %1447 = vmatpush1.msra.mxu0 0.0
    %1448 = vmatprep.subr.mxu0 0.0
    %1449 = vmatpush1.msra.mxu0 0.0
    %1450 = vmatprep.subr.mxu0 0.0
    %1451 = vmatpush1.msra.mxu0 0.0
    %1452 = vmatprep.subr.mxu0 0.0
    %1453 = vmatpush1.msra.mxu0 0.0
    %1454 = vmatprep.subr.mxu0 0.0
    %1455 = vmatpush1.msra.mxu0 0.0
    %1456 = vmatprep.subr.mxu0 0.0
    %1457 = vmatpush1.msra.mxu0 0.0
    %1458 = vmatprep.subr.mxu0 0.0
    %1459 = vmatpush1.msra.mxu0 0.0
    %1460 = vmatprep.subr.mxu0 0.0
    %1461 = vmatpush1.msra.mxu0 0.0
    %1462 = vmatprep.subr.mxu0 0.0
    %1463 = vmatpush1.msra.mxu0 0.0
    %1464 = vmatprep.subr.mxu0 0.0
    %1465 = vmatpush1.msra.mxu0 0.0
    %1466 = vmatprep.subr.mxu0 0.0
    %1467 = vmatpush1.msra.mxu0 0.0
    %1468 = vmatprep.subr.mxu0 0.0
    %1469 = vmatpush1.msra.mxu0 0.0
    %1470 = vmatprep.subr.mxu0 0.0
    %1471 = vmatpush1.msra.mxu0 0.0
    %1472 = vmatprep.subr.mxu0 0.0
    %1473 = vmatpush1.msra.mxu0 0.0
    %1474 = vmatprep.subr.mxu0 0.0
    %1475 = vmatpush1.msra.mxu0 0.0
    %1476 = vmatprep.subr.mxu0 0.0
    %1477 = vmatpush1.msra.mxu0 0.0
    %1478 = vmatprep.subr.mxu0 0.0
    %1479 = vmatpush1.msra.mxu0 0.0
    %1480 = vmatprep.subr.mxu0 0.0
    %1481 = vmatpush1.msra.mxu0 0.0
    %1482 = vmatprep.subr.mxu0 0.0
    %1483 = vmatpush1.msra.mxu0 0.0
    %1484 = vmatprep.subr.mxu0 0.0
    %1485 = vmatpush1.msra.mxu0 0.0
    %1486 = vmatprep.subr.mxu0 0.0
    %1487 = vmatpush1.msra.mxu0 0.0
    %1488 = vmatprep.subr.mxu0 0.0
    %1489 = vmatpush1.msra.mxu0 0.0
    %1490 = vmatprep.mubr.f32.mxu0 0.0
    %1491 = vmatmul.mubr.f32.gmra.mrb[0].mxu0 %v1275
    %v1492 = vpop.f32.mrb[0].mxu0
    %v1493 = vadd.f32 0.0, %v1492
    %v1494 = vpop.f32.mrb[0].mxu0
    %1495 = vdwg.mxu0
    %v1496 = vadd.f32 %v211, %v1493
    %v1497 = vtanh.pop %v1496
    %v1499 = vsel %vm224, %v1497, 0
    %1501 = vmatprep.subr.mxu0 0.0
    %1502 = vmatpush1.msra.mxu0 %v23
    %1503 = vmatprep.subr.mxu0 0.0
    %1504 = vmatpush1.msra.mxu0 %v24
    %1505 = vmatprep.subr.mxu0 0.0
    %1506 = vmatpush1.msra.mxu0 %v25
    %1507 = vmatprep.subr.mxu0 0.0
    %1508 = vmatpush1.msra.mxu0 %v26
    %1509 = vmatprep.subr.mxu0 0.0
    %1510 = vmatpush1.msra.mxu0 0.0
    %1511 = vmatprep.subr.mxu0 0.0
    %1512 = vmatpush1.msra.mxu0 0.0
    %1513 = vmatprep.subr.mxu0 0.0
    %1514 = vmatpush1.msra.mxu0 0.0
    %1515 = vmatprep.subr.mxu0 0.0
    %1516 = vmatpush1.msra.mxu0 0.0
    %1517 = vmatprep.subr.mxu0 0.0
    %1518 = vmatpush1.msra.mxu0 0.0
    %1519 = vmatprep.subr.mxu0 0.0
    %1520 = vmatpush1.msra.mxu0 0.0
    %1521 = vmatprep.subr.mxu0 0.0
    %1522 = vmatpush1.msra.mxu0 0.0
    %1523 = vmatprep.subr.mxu0 0.0
    %1524 = vmatpush1.msra.mxu0 0.0
    %1525 = vmatprep.subr.mxu0 0.0
    %1526 = vmatpush1.msra.mxu0 0.0
    %1527 = vmatprep.subr.mxu0 0.0
    %1528 = vmatpush1.msra.mxu0 0.0
    %1529 = vmatprep.subr.mxu0 0.0
    %1530 = vmatpush1.msra.mxu0 0.0
    %1531 = vmatprep.subr.mxu0 0.0
    %1532 = vmatpush1.msra.mxu0 0.0
    %1533 = vmatprep.subr.mxu0 0.0
    %1534 = vmatpush1.msra.mxu0 0.0
    %1535 = vmatprep.subr.mxu0 0.0
    %1536 = vmatpush1.msra.mxu0 0.0
    %1537 = vmatprep.subr.mxu0 0.0
    %1538 = vmatpush1.msra.mxu0 0.0
    %1539 = vmatprep.subr.mxu0 0.0
    %1540 = vmatpush1.msra.mxu0 0.0
    %1541 = vmatprep.subr.mxu0 0.0
    %1542 = vmatpush1.msra.mxu0 0.0
    %1543 = vmatprep.subr.mxu0 0.0
    %1544 = vmatpush1.msra.mxu0 0.0
    %1545 = vmatprep.subr.mxu0 0.0
    %1546 = vmatpush1.msra.mxu0 0.0
    %1547 = vmatprep.subr.mxu0 0.0
    %1548 = vmatpush1.msra.mxu0 0.0
    %1549 = vmatprep.subr.mxu0 0.0
    %1550 = vmatpush1.msra.mxu0 0.0
    %1551 = vmatprep.subr.mxu0 0.0
    %1552 = vmatpush1.msra.mxu0 0.0
    %1553 = vmatprep.subr.mxu0 0.0
    %1554 = vmatpush1.msra.mxu0 0.0
    %1555 = vmatprep.subr.mxu0 0.0
    %1556 = vmatpush1.msra.mxu0 0.0
    %1557 = vmatprep.subr.mxu0 0.0
    %1558 = vmatpush1.msra.mxu0 0.0
    %1559 = vmatprep.subr.mxu0 0.0
    %1560 = vmatpush1.msra.mxu0 0.0
    %1561 = vmatprep.subr.mxu0 0.0
    %1562 = vmatpush1.msra.mxu0 0.0
    %1563 = vmatprep.subr.mxu0 0.0
    %1564 = vmatpush1.msra.mxu0 0.0
    %1565 = vmatprep.mubr.f32.mxu0 0.0
    %1566 = vmatmul.mubr.f32.gmra.mrb[0].mxu0 %v1499
    %v1567 = vpop.f32.mrb[0].mxu0
    %v1568 = vadd.f32 %v1423, %v1567
    %v1569 = vpop.f32.mrb[0].mxu0
    %1570 = vdwg.mxu0
    %v1571 = vadd.f32 %v1568, %v446
    %v1572 = vtanh.pop %v1571
    %v1573 = vmul.f32 %v1572, %v452
    %v1574 = vsel %vm224, %v1573, 0.0
    %1575 = vadd.xlane.f32.xlu0 %v1574
    %v1576 = vpop.xlane.xlu0 %1575
    %v1578 = vsel %vm224, %v1572, 0
    %1580 = vmatprep.subr.mxu0 0.0
    %1581 = vmatpush1.msra.mxu0 %v27
    %1582 = vmatprep.subr.mxu0 0.0
    %1583 = vmatpush1.msra.mxu0 %v28
    %1584 = vmatprep.subr.mxu0 0.0
    %1585 = vmatpush1.msra.mxu0 %v29
    %1586 = vmatprep.subr.mxu0 0.0
    %1587 = vmatpush1.msra.mxu0 %v30
    %1588 = vmatprep.subr.mxu0 0.0
    %1589 = vmatpush1.msra.mxu0 0.0
    %1590 = vmatprep.subr.mxu0 0.0
    %1591 = vmatpush1.msra.mxu0 0.0
    %1592 = vmatprep.subr.mxu0 0.0
    %1593 = vmatpush1.msra.mxu0 0.0
    %1594 = vmatprep.subr.mxu0 0.0
    %1595 = vmatpush1.msra.mxu0 0.0
    %1596 = vmatprep.subr.mxu0 0.0
    %1597 = vmatpush1.msra.mxu0 0.0
    %1598 = vmatprep.subr.mxu0 0.0
    %1599 = vmatpush1.msra.mxu0 0.0
    %1600 = vmatprep.subr.mxu0 0.0
    %1601 = vmatpush1.msra.mxu0 0.0
    %1602 = vmatprep.subr.mxu0 0.0
    %1603 = vmatpush1.msra.mxu0 0.0
    %1604 = vmatprep.subr.mxu0 0.0
    %1605 = vmatpush1.msra.mxu0 0.0
    %1606 = vmatprep.subr.mxu0 0.0
    %1607 = vmatpush1.msra.mxu0 0.0
    %1608 = vmatprep.subr.mxu0 0.0
    %1609 = vmatpush1.msra.mxu0 0.0
    %1610 = vmatprep.subr.mxu0 0.0
    %1611 = vmatpush1.msra.mxu0 0.0
    %1612 = vmatprep.subr.mxu0 0.0
    %1613 = vmatpush1.msra.mxu0 0.0
    %1614 = vmatprep.subr.mxu0 0.0
    %1615 = vmatpush1.msra.mxu0 0.0
    %1616 = vmatprep.subr.mxu0 0.0
    %1617 = vmatpush1.msra.mxu0 0.0
    %1618 = vmatprep.subr.mxu0 0.0
    %1619 = vmatpush1.msra.mxu0 0.0
    %1620 = vmatprep.subr.mxu0 0.0
    %1621 = vmatpush1.msra.mxu0 0.0
    %1622 = vmatprep.subr.mxu0 0.0
    %1623 = vmatpush1.msra.mxu0 0.0
    %1624 = vmatprep.subr.mxu0 0.0
    %1625 = vmatpush1.msra.mxu0 0.0
    %1626 = vmatprep.subr.mxu0 0.0
    %1627 = vmatpush1.msra.mxu0 0.0
    %1628 = vmatprep.subr.mxu0 0.0
    %1629 = vmatpush1.msra.mxu0 0.0
    %1630 = vmatprep.subr.mxu0 0.0
    %1631 = vmatpush1.msra.mxu0 0.0
    %1632 = vmatprep.subr.mxu0 0.0
    %1633 = vmatpush1.msra.mxu0 0.0
    %1634 = vmatprep.subr.mxu0 0.0
    %1635 = vmatpush1.msra.mxu0 0.0
    %1636 = vmatprep.subr.mxu0 0.0
    %1637 = vmatpush1.msra.mxu0 0.0
    %1638 = vmatprep.subr.mxu0 0.0
    %1639 = vmatpush1.msra.mxu0 0.0
    %1640 = vmatprep.subr.mxu0 0.0
    %1641 = vmatpush1.msra.mxu0 0.0
    %1642 = vmatprep.subr.mxu0 0.0
    %1643 = vmatpush1.msra.mxu0 0.0
    %1644 = vmatprep.mubr.f32.mxu0 0.0
    %1645 = vmatmul.mubr.f32.gmra.mrb[0].mxu0 %v1578
    %v1646 = vpop.f32.mrb[0].mxu0
    %v1647 = vadd.f32 0.0, %v1646
    %v1648 = vpop.f32.mrb[0].mxu0
    %1649 = vdwg.mxu0
    %1650 = vmatprep.subr.mxu0 0.0
    %1651 = vmatpush1.msra.mxu0 %v19
    %1652 = vmatprep.subr.mxu0 0.0
    %1653 = vmatpush1.msra.mxu0 %v20
    %1654 = vmatprep.subr.mxu0 0.0
    %1655 = vmatpush1.msra.mxu0 %v21
    %1656 = vmatprep.subr.mxu0 0.0
    %1657 = vmatpush1.msra.mxu0 %v22
    %1658 = vmatprep.subr.mxu0 0.0
    %1659 = vmatpush1.msra.mxu0 0.0
    %1660 = vmatprep.subr.mxu0 0.0
    %1661 = vmatpush1.msra.mxu0 0.0
    %1662 = vmatprep.subr.mxu0 0.0
    %1663 = vmatpush1.msra.mxu0 0.0
    %1664 = vmatprep.subr.mxu0 0.0
    %1665 = vmatpush1.msra.mxu0 0.0
    %1666 = vmatprep.subr.mxu0 0.0
    %1667 = vmatpush1.msra.mxu0 0.0
    %1668 = vmatprep.subr.mxu0 0.0
    %1669 = vmatpush1.msra.mxu0 0.0
    %1670 = vmatprep.subr.mxu0 0.0
    %1671 = vmatpush1.msra.mxu0 0.0
    %1672 = vmatprep.subr.mxu0 0.0
    %1673 = vmatpush1.msra.mxu0 0.0
    %1674 = vmatprep.subr.mxu0 0.0
    %1675 = vmatpush1.msra.mxu0 0.0
    %1676 = vmatprep.subr.mxu0 0.0
    %1677 = vmatpush1.msra.mxu0 0.0
    %1678 = vmatprep.subr.mxu0 0.0
    %1679 = vmatpush1.msra.mxu0 0.0
    %1680 = vmatprep.subr.mxu0 0.0
    %1681 = vmatpush1.msra.mxu0 0.0
    %1682 = vmatprep.subr.mxu0 0.0
    %1683 = vmatpush1.msra.mxu0 0.0
    %1684 = vmatprep.subr.mxu0 0.0
    %1685 = vmatpush1.msra.mxu0 0.0
    %1686 = vmatprep.subr.mxu0 0.0
    %1687 = vmatpush1.msra.mxu0 0.0
    %1688 = vmatprep.subr.mxu0 0.0
    %1689 = vmatpush1.msra.mxu0 0.0
    %1690 = vmatprep.subr.mxu0 0.0
    %1691 = vmatpush1.msra.mxu0 0.0
    %1692 = vmatprep.subr.mxu0 0.0
    %1693 = vmatpush1.msra.mxu0 0.0
    %1694 = vmatprep.subr.mxu0 0.0
    %1695 = vmatpush1.msra.mxu0 0.0
    %1696 = vmatprep.subr.mxu0 0.0
    %1697 = vmatpush1.msra.mxu0 0.0
    %1698 = vmatprep.subr.mxu0 0.0
    %1699 = vmatpush1.msra.mxu0 0.0
    %1700 = vmatprep.subr.mxu0 0.0
    %1701 = vmatpush1.msra.mxu0 0.0
    %1702 = vmatprep.subr.mxu0 0.0
    %1703 = vmatpush1.msra.mxu0 0.0
    %1704 = vmatprep.subr.mxu0 0.0
    %1705 = vmatpush1.msra.mxu0 0.0
    %1706 = vmatprep.subr.mxu0 0.0
    %1707 = vmatpush1.msra.mxu0 0.0
    %1708 = vmatprep.subr.mxu0 0.0
    %1709 = vmatpush1.msra.mxu0 0.0
    %1710 = vmatprep.subr.mxu0 0.0
    %1711 = vmatpush1.msra.mxu0 0.0
    %1712 = vmatprep.subr.mxu0 0.0
    %1713 = vmatpush1.msra.mxu0 0.0
    %1714 = vmatprep.mubr.f32.mxu0 0.0
    %1715 = vmatmul.mubr.f32.gmra.mrb[0].mxu0 %v1499
    %v1716 = vpop.f32.mrb[0].mxu0
    %v1717 = vadd.f32 0.0, %v1716
    %v1718 = vpop.f32.mrb[0].mxu0
    %1719 = vdwg.mxu0
    %v1720 = vadd.f32 %v216, %v1717
    %v1721 = vtanh.pop %v1720
    %v1723 = vsel %vm224, %v1721, 0
    %1725 = vmatprep.subr.mxu0 0.0
    %1726 = vmatpush1.msra.mxu0 %v23
    %1727 = vmatprep.subr.mxu0 0.0
    %1728 = vmatpush1.msra.mxu0 %v24
    %1729 = vmatprep.subr.mxu0 0.0
    %1730 = vmatpush1.msra.mxu0 %v25
    %1731 = vmatprep.subr.mxu0 0.0
    %1732 = vmatpush1.msra.mxu0 %v26
    %1733 = vmatprep.subr.mxu0 0.0
    %1734 = vmatpush1.msra.mxu0 0.0
    %1735 = vmatprep.subr.mxu0 0.0
    %1736 = vmatpush1.msra.mxu0 0.0
    %1737 = vmatprep.subr.mxu0 0.0
    %1738 = vmatpush1.msra.mxu0 0.0
    %1739 = vmatprep.subr.mxu0 0.0
    %1740 = vmatpush1.msra.mxu0 0.0
    %1741 = vmatprep.subr.mxu0 0.0
    %1742 = vmatpush1.msra.mxu0 0.0
    %1743 = vmatprep.subr.mxu0 0.0
    %1744 = vmatpush1.msra.mxu0 0.0
    %1745 = vmatprep.subr.mxu0 0.0
    %1746 = vmatpush1.msra.mxu0 0.0
    %1747 = vmatprep.subr.mxu0 0.0
    %1748 = vmatpush1.msra.mxu0 0.0
    %1749 = vmatprep.subr.mxu0 0.0
    %1750 = vmatpush1.msra.mxu0 0.0
    %1751 = vmatprep.subr.mxu0 0.0
    %1752 = vmatpush1.msra.mxu0 0.0
    %1753 = vmatprep.subr.mxu0 0.0
    %1754 = vmatpush1.msra.mxu0 0.0
    %1755 = vmatprep.subr.mxu0 0.0
    %1756 = vmatpush1.msra.mxu0 0.0
    %1757 = vmatprep.subr.mxu0 0.0
    %1758 = vmatpush1.msra.mxu0 0.0
    %1759 = vmatprep.subr.mxu0 0.0
    %1760 = vmatpush1.msra.mxu0 0.0
    %1761 = vmatprep.subr.mxu0 0.0
    %1762 = vmatpush1.msra.mxu0 0.0
    %1763 = vmatprep.subr.mxu0 0.0
    %1764 = vmatpush1.msra.mxu0 0.0
    %1765 = vmatprep.subr.mxu0 0.0
    %1766 = vmatpush1.msra.mxu0 0.0
    %1767 = vmatprep.subr.mxu0 0.0
    %1768 = vmatpush1.msra.mxu0 0.0
    %1769 = vmatprep.subr.mxu0 0.0
    %1770 = vmatpush1.msra.mxu0 0.0
    %1771 = vmatprep.subr.mxu0 0.0
    %1772 = vmatpush1.msra.mxu0 0.0
    %1773 = vmatprep.subr.mxu0 0.0
    %1774 = vmatpush1.msra.mxu0 0.0
    %1775 = vmatprep.subr.mxu0 0.0
    %1776 = vmatpush1.msra.mxu0 0.0
    %1777 = vmatprep.subr.mxu0 0.0
    %1778 = vmatpush1.msra.mxu0 0.0
    %1779 = vmatprep.subr.mxu0 0.0
    %1780 = vmatpush1.msra.mxu0 0.0
    %1781 = vmatprep.subr.mxu0 0.0
    %1782 = vmatpush1.msra.mxu0 0.0
    %1783 = vmatprep.subr.mxu0 0.0
    %1784 = vmatpush1.msra.mxu0 0.0
    %1785 = vmatprep.subr.mxu0 0.0
    %1786 = vmatpush1.msra.mxu0 0.0
    %1787 = vmatprep.subr.mxu0 0.0
    %1788 = vmatpush1.msra.mxu0 0.0
    %1789 = vmatprep.mubr.f32.mxu0 0.0
    %1790 = vmatmul.mubr.f32.gmra.mrb[0].mxu0 %v1723
    %v1791 = vpop.f32.mrb[0].mxu0
    %v1792 = vadd.f32 %v1647, %v1791
    %v1793 = vpop.f32.mrb[0].mxu0
    %1794 = vdwg.mxu0
    %v1795 = vadd.f32 %v1792, %v446
    %v1796 = vtanh.pop %v1795
    %v1797 = vmul.f32 %v1796, %v452
    %v1798 = vsel %vm224, %v1797, 0.0
    %1799 = vadd.xlane.f32.xlu0 %v1798
    %v1800 = vpop.xlane.xlu0 %1799
    %v1802 = vsel %vm224, %v1796, 0
    %1804 = vmatprep.subr.mxu0 0.0
    %1805 = vmatpush1.msra.mxu0 %v27
    %1806 = vmatprep.subr.mxu0 0.0
    %1807 = vmatpush1.msra.mxu0 %v28
    %1808 = vmatprep.subr.mxu0 0.0
    %1809 = vmatpush1.msra.mxu0 %v29
    %1810 = vmatprep.subr.mxu0 0.0
    %1811 = vmatpush1.msra.mxu0 %v30
    %1812 = vmatprep.subr.mxu0 0.0
    %1813 = vmatpush1.msra.mxu0 0.0
    %1814 = vmatprep.subr.mxu0 0.0
    %1815 = vmatpush1.msra.mxu0 0.0
    %1816 = vmatprep.subr.mxu0 0.0
    %1817 = vmatpush1.msra.mxu0 0.0
    %1818 = vmatprep.subr.mxu0 0.0
    %1819 = vmatpush1.msra.mxu0 0.0
    %1820 = vmatprep.subr.mxu0 0.0
    %1821 = vmatpush1.msra.mxu0 0.0
    %1822 = vmatprep.subr.mxu0 0.0
    %1823 = vmatpush1.msra.mxu0 0.0
    %1824 = vmatprep.subr.mxu0 0.0
    %1825 = vmatpush1.msra.mxu0 0.0
    %1826 = vmatprep.subr.mxu0 0.0
    %1827 = vmatpush1.msra.mxu0 0.0
    %1828 = vmatprep.subr.mxu0 0.0
    %1829 = vmatpush1.msra.mxu0 0.0
    %1830 = vmatprep.subr.mxu0 0.0
    %1831 = vmatpush1.msra.mxu0 0.0
    %1832 = vmatprep.subr.mxu0 0.0
    %1833 = vmatpush1.msra.mxu0 0.0
    %1834 = vmatprep.subr.mxu0 0.0
    %1835 = vmatpush1.msra.mxu0 0.0
    %1836 = vmatprep.subr.mxu0 0.0
    %1837 = vmatpush1.msra.mxu0 0.0
    %1838 = vmatprep.subr.mxu0 0.0
    %1839 = vmatpush1.msra.mxu0 0.0
    %1840 = vmatprep.subr.mxu0 0.0
    %1841 = vmatpush1.msra.mxu0 0.0
    %1842 = vmatprep.subr.mxu0 0.0
    %1843 = vmatpush1.msra.mxu0 0.0
    %1844 = vmatprep.subr.mxu0 0.0
    %1845 = vmatpush1.msra.mxu0 0.0
    %1846 = vmatprep.subr.mxu0 0.0
    %1847 = vmatpush1.msra.mxu0 0.0
    %1848 = vmatprep.subr.mxu0 0.0
    %1849 = vmatpush1.msra.mxu0 0.0
    %1850 = vmatprep.subr.mxu0 0.0
    %1851 = vmatpush1.msra.mxu0 0.0
    %1852 = vmatprep.subr.mxu0 0.0
    %1853 = vmatpush1.msra.mxu0 0.0
    %1854 = vmatprep.subr.mxu0 0.0
    %1855 = vmatpush1.msra.mxu0 0.0
    %1856 = vmatprep.subr.mxu0 0.0
    %1857 = vmatpush1.msra.mxu0 0.0
    %1858 = vmatprep.subr.mxu0 0.0
    %1859 = vmatpush1.msra.mxu0 0.0
    %1860 = vmatprep.subr.mxu0 0.0
    %1861 = vmatpush1.msra.mxu0 0.0
    %1862 = vmatprep.subr.mxu0 0.0
    %1863 = vmatpush1.msra.mxu0 0.0
    %1864 = vmatprep.subr.mxu0 0.0
    %1865 = vmatpush1.msra.mxu0 0.0
    %1866 = vmatprep.subr.mxu0 0.0
    %1867 = vmatpush1.msra.mxu0 0.0
    %1868 = vmatprep.mubr.f32.mxu0 0.0
    %1869 = vmatmul.mubr.f32.gmra.mrb[0].mxu0 %v1802
    %v1870 = vpop.f32.mrb[0].mxu0
    %v1871 = vadd.f32 0.0, %v1870
    %v1872 = vpop.f32.mrb[0].mxu0
    %1873 = vdwg.mxu0
    %1874 = vmatprep.subr.mxu0 0.0
    %1875 = vmatpush1.msra.mxu0 %v19
    %1876 = vmatprep.subr.mxu0 0.0
    %1877 = vmatpush1.msra.mxu0 %v20
    %1878 = vmatprep.subr.mxu0 0.0
    %1879 = vmatpush1.msra.mxu0 %v21
    %1880 = vmatprep.subr.mxu0 0.0
    %1881 = vmatpush1.msra.mxu0 %v22
    %1882 = vmatprep.subr.mxu0 0.0
    %1883 = vmatpush1.msra.mxu0 0.0
    %1884 = vmatprep.subr.mxu0 0.0
    %1885 = vmatpush1.msra.mxu0 0.0
    %1886 = vmatprep.subr.mxu0 0.0
    %1887 = vmatpush1.msra.mxu0 0.0
    %1888 = vmatprep.subr.mxu0 0.0
    %1889 = vmatpush1.msra.mxu0 0.0
    %1890 = vmatprep.subr.mxu0 0.0
    %1891 = vmatpush1.msra.mxu0 0.0
    %1892 = vmatprep.subr.mxu0 0.0
    %1893 = vmatpush1.msra.mxu0 0.0
    %1894 = vmatprep.subr.mxu0 0.0
    %1895 = vmatpush1.msra.mxu0 0.0
    %1896 = vmatprep.subr.mxu0 0.0
    %1897 = vmatpush1.msra.mxu0 0.0
    %1898 = vmatprep.subr.mxu0 0.0
    %1899 = vmatpush1.msra.mxu0 0.0
    %1900 = vmatprep.subr.mxu0 0.0
    %1901 = vmatpush1.msra.mxu0 0.0
    %1902 = vmatprep.subr.mxu0 0.0
    %1903 = vmatpush1.msra.mxu0 0.0
    %1904 = vmatprep.subr.mxu0 0.0
    %1905 = vmatpush1.msra.mxu0 0.0
    %1906 = vmatprep.subr.mxu0 0.0
    %1907 = vmatpush1.msra.mxu0 0.0
    %1908 = vmatprep.subr.mxu0 0.0
    %1909 = vmatpush1.msra.mxu0 0.0
    %1910 = vmatprep.subr.mxu0 0.0
    %1911 = vmatpush1.msra.mxu0 0.0
    %1912 = vmatprep.subr.mxu0 0.0
    %1913 = vmatpush1.msra.mxu0 0.0
    %1914 = vmatprep.subr.mxu0 0.0
    %1915 = vmatpush1.msra.mxu0 0.0
    %1916 = vmatprep.subr.mxu0 0.0
    %1917 = vmatpush1.msra.mxu0 0.0
    %1918 = vmatprep.subr.mxu0 0.0
    %1919 = vmatpush1.msra.mxu0 0.0
    %1920 = vmatprep.subr.mxu0 0.0
    %1921 = vmatpush1.msra.mxu0 0.0
    %1922 = vmatprep.subr.mxu0 0.0
    %1923 = vmatpush1.msra.mxu0 0.0
    %1924 = vmatprep.subr.mxu0 0.0
    %1925 = vmatpush1.msra.mxu0 0.0
    %1926 = vmatprep.subr.mxu0 0.0
    %1927 = vmatpush1.msra.mxu0 0.0
    %1928 = vmatprep.subr.mxu0 0.0
    %1929 = vmatpush1.msra.mxu0 0.0
    %1930 = vmatprep.subr.mxu0 0.0
    %1931 = vmatpush1.msra.mxu0 0.0
    %1932 = vmatprep.subr.mxu0 0.0
    %1933 = vmatpush1.msra.mxu0 0.0
    %1934 = vmatprep.subr.mxu0 0.0
    %1935 = vmatpush1.msra.mxu0 0.0
    %1936 = vmatprep.subr.mxu0 0.0
    %1937 = vmatpush1.msra.mxu0 0.0
    %1938 = vmatprep.mubr.f32.mxu0 0.0
    %1939 = vmatmul.mubr.f32.gmra.mrb[0].mxu0 %v1723
    %v1940 = vpop.f32.mrb[0].mxu0
    %v1941 = vadd.f32 0.0, %v1940
    %v1942 = vpop.f32.mrb[0].mxu0
    %1943 = vdwg.mxu0
    %v1944 = vadd.f32 %v221, %v1941
    %v1945 = vtanh.pop %v1944
    %v1947 = vsel %vm224, %v1945, 0
    %1949 = vmatprep.subr.mxu0 0.0
    %1950 = vmatpush1.msra.mxu0 %v23
    %1951 = vmatprep.subr.mxu0 0.0
    %1952 = vmatpush1.msra.mxu0 %v24
    %1953 = vmatprep.subr.mxu0 0.0
    %1954 = vmatpush1.msra.mxu0 %v25
    %1955 = vmatprep.subr.mxu0 0.0
    %1956 = vmatpush1.msra.mxu0 %v26
    %1957 = vmatprep.subr.mxu0 0.0
    %1958 = vmatpush1.msra.mxu0 0.0
    %1959 = vmatprep.subr.mxu0 0.0
    %1960 = vmatpush1.msra.mxu0 0.0
    %1961 = vmatprep.subr.mxu0 0.0
    %1962 = vmatpush1.msra.mxu0 0.0
    %1963 = vmatprep.subr.mxu0 0.0
    %1964 = vmatpush1.msra.mxu0 0.0
    %1965 = vmatprep.subr.mxu0 0.0
    %1966 = vmatpush1.msra.mxu0 0.0
    %1967 = vmatprep.subr.mxu0 0.0
    %1968 = vmatpush1.msra.mxu0 0.0
    %1969 = vmatprep.subr.mxu0 0.0
    %1970 = vmatpush1.msra.mxu0 0.0
    %1971 = vmatprep.subr.mxu0 0.0
    %1972 = vmatpush1.msra.mxu0 0.0
    %1973 = vmatprep.subr.mxu0 0.0
    %1974 = vmatpush1.msra.mxu0 0.0
    %1975 = vmatprep.subr.mxu0 0.0
    %1976 = vmatpush1.msra.mxu0 0.0
    %1977 = vmatprep.subr.mxu0 0.0
    %1978 = vmatpush1.msra.mxu0 0.0
    %1979 = vmatprep.subr.mxu0 0.0
    %1980 = vmatpush1.msra.mxu0 0.0
    %1981 = vmatprep.subr.mxu0 0.0
    %1982 = vmatpush1.msra.mxu0 0.0
    %1983 = vmatprep.subr.mxu0 0.0
    %1984 = vmatpush1.msra.mxu0 0.0
    %1985 = vmatprep.subr.mxu0 0.0
    %1986 = vmatpush1.msra.mxu0 0.0
    %1987 = vmatprep.subr.mxu0 0.0
    %1988 = vmatpush1.msra.mxu0 0.0
    %1989 = vmatprep.subr.mxu0 0.0
    %1990 = vmatpush1.msra.mxu0 0.0
    %1991 = vmatprep.subr.mxu0 0.0
    %1992 = vmatpush1.msra.mxu0 0.0
    %1993 = vmatprep.subr.mxu0 0.0
    %1994 = vmatpush1.msra.mxu0 0.0
    %1995 = vmatprep.subr.mxu0 0.0
    %1996 = vmatpush1.msra.mxu0 0.0
    %1997 = vmatprep.subr.mxu0 0.0
    %1998 = vmatpush1.msra.mxu0 0.0
    %1999 = vmatprep.subr.mxu0 0.0
    %2000 = vmatpush1.msra.mxu0 0.0
    %2001 = vmatprep.subr.mxu0 0.0
    %2002 = vmatpush1.msra.mxu0 0.0
    %2003 = vmatprep.subr.mxu0 0.0
    %2004 = vmatpush1.msra.mxu0 0.0
    %2005 = vmatprep.subr.mxu0 0.0
    %2006 = vmatpush1.msra.mxu0 0.0
    %2007 = vmatprep.subr.mxu0 0.0
    %2008 = vmatpush1.msra.mxu0 0.0
    %2009 = vmatprep.subr.mxu0 0.0
    %2010 = vmatpush1.msra.mxu0 0.0
    %2011 = vmatprep.subr.mxu0 0.0
    %2012 = vmatpush1.msra.mxu0 0.0
    %2013 = vmatprep.mubr.f32.mxu0 0.0
    %2014 = vmatmul.mubr.f32.gmra.mrb[0].mxu0 %v1947
    %v2015 = vpop.f32.mrb[0].mxu0
    %v2016 = vadd.f32 %v1871, %v2015
    %v2017 = vpop.f32.mrb[0].mxu0
    %2018 = vdwg.mxu0
    %v2019 = vadd.f32 %v2016, %v446
    %v2020 = vtanh.pop %v2019
    %v2021 = vmul.f32 %v2020, %v452
    %v2022 = vsel %vm224, %v2021, 0.0
    %2023 = vadd.xlane.f32.xlu0 %v2022
    %v2024 = vpop.xlane.xlu0 %2023
    %vm2025 = vcmask 7168
    %v2026 = vsel %vm2025, %v456, %v680
    %vm2027 = vcmask 15360
    %v2028 = vsel %vm2027, %v2026, %v904
    %vm2029 = vcmask 23552
    %v2030 = vsel %vm2029, %v2028, %v1128
    %vm2031 = vcmask 31744
    %v2032 = vsel %vm2031, %v2030, %v1352
    %vm2033 = vcmask 39936
    %v2034 = vsel %vm2033, %v2032, %v1576
    %vm2035 = vcmask 48128
    %v2036 = vsel %vm2035, %v2034, %v1800
    %vm2037 = vcmask 56320
    %v2038 = vsel %vm2037, %v2036, %v2024
    %vm2039 = vcmask 64512
    %v2040 = vsel %vm2039, %v2038, -inf
    %2041 = vmax.xlane.f32.xlu0 %v2040
    %v2042 = vpop.xlane.xlu0 %2041
    %v2043 = vsub.f32 %v2038, %v2042
    %v2044 = vmul.f32 %v2043, 1.442695
    %v2045 = vpow.pop %v2044
    %v2046 = vsel %vm2039, %v2045, 0.0
    %2047 = vadd.xlane.f32.xlu0 %v2046
    %v2048 = vpop.xlane.xlu0 %2047
    %v2049 = vrcp.pop %v2048
    %v2050 = vmul.f32 %v2045, %v2049
    %2052 = vset.pattern.permute.xlu0 0
    %2053 = vperm.xlu0 %2052, %v2050
    %v2054 = vpop.permute.xlu0 %2053
    %v2056 = vmul.f32 %v2054, %v448
    %v2057 = vadd.f32 %v2056, 0.0
    %2058 = vset.pattern.permute.xlu0 1
    %2059 = vperm.xlu0 %2058, %v2050
    %v2060 = vpop.permute.xlu0 %2059
    %v2062 = vmul.f32 %v2060, %v676
    %v2063 = vadd.f32 %v2057, %v2062
    %2064 = vset.pattern.permute.xlu0 2
    %2065 = vperm.xlu0 %2064, %v2050
    %v2066 = vpop.permute.xlu0 %2065
    %v2068 = vmul.f32 %v2066, %v900
    %v2069 = vadd.f32 %v2063, %v2068
    %2070 = vset.pattern.permute.xlu0 3
    %2071 = vperm.xlu0 %2070, %v2050
    %v2072 = vpop.permute.xlu0 %2071
    %v2074 = vmul.f32 %v2072, %v1124
    %v2075 = vadd.f32 %v2069, %v2074
    %2076 = vset.pattern.permute.xlu0 4
    %2077 = vperm.xlu0 %2076, %v2050
    %v2078 = vpop.permute.xlu0 %2077
    %v2080 = vmul.f32 %v2078, %v1348
    %v2081 = vadd.f32 %v2075, %v2080
    %2082 = vset.pattern.permute.xlu0 5
    %2083 = vperm.xlu0 %2082, %v2050
    %v2084 = vpop.permute.xlu0 %2083
    %v2086 = vmul.f32 %v2084, %v1572
    %v2087 = vadd.f32 %v2081, %v2086
    %2088 = vset.pattern.permute.xlu0 6
    %2089 = vperm.xlu0 %2088, %v2050
    %v2090 = vpop.permute.xlu0 %2089
    %v2092 = vmul.f32 %v2090, %v1796
    %v2093 = vadd.f32 %v2087, %v2092
    %2094 = vset.pattern.permute.xlu0 7
    %2095 = vperm.xlu0 %2094, %v2050
    %v2096 = vpop.permute.xlu0 %2095
    %v2098 = vmul.f32 %v2096, %v2020
    %v2099 = vadd.f32 %v2093, %v2098
    %v2101 = vsel %vm224, %v2099, 0
    %2103 = vmatprep.subr.mxu0 0.0
    %2104 = vmatpush1.msra.mxu0 %v35
    %2105 = vmatprep.subr.mxu0 0.0
    %2106 = vmatpush1.msra.mxu0 %v36
    %2107 = vmatprep.subr.mxu0 0.0
    %2108 = vmatpush1.msra.mxu0 %v37
    %2109 = vmatprep.subr.mxu0 0.0
    %2110 = vmatpush1.msra.mxu0 %v38
    %2111 = vmatprep.subr.mxu0 0.0
    %2112 = vmatpush1.msra.mxu0 0.0
    %2113 = vmatprep.subr.mxu0 0.0
    %2114 = vmatpush1.msra.mxu0 0.0
    %2115 = vmatprep.subr.mxu0 0.0
    %2116 = vmatpush1.msra.mxu0 0.0
    %2117 = vmatprep.subr.mxu0 0.0
    %2118 = vmatpush1.msra.mxu0 0.0
    %2119 = vmatprep.subr.mxu0 0.0
    %2120 = vmatpush1.msra.mxu0 0.0
    %2121 = vmatprep.subr.mxu0 0.0
    %2122 = vmatpush1.msra.mxu0 0.0
    %2123 = vmatprep.subr.mxu0 0.0
    %2124 = vmatpush1.msra.mxu0 0.0
    %2125 = vmatprep.subr.mxu0 0.0
    %2126 = vmatpush1.msra.mxu0 0.0
    %2127 = vmatprep.subr.mxu0 0.0
    %2128 = vmatpush1.msra.mxu0 0.0
    %2129 = vmatprep.subr.mxu0 0.0
    %2130 = vmatpush1.msra.mxu0 0.0
    %2131 = vmatprep.subr.mxu0 0.0
    %2132 = vmatpush1.msra.mxu0 0.0
    %2133 = vmatprep.subr.mxu0 0.0
    %2134 = vmatpush1.msra.mxu0 0.0
    %2135 = vmatprep.subr.mxu0 0.0
    %2136 = vmatpush1.msra.mxu0 0.0
    %2137 = vmatprep.subr.mxu0 0.0
    %2138 = vmatpush1.msra.mxu0 0.0
    %2139 = vmatprep.subr.mxu0 0.0
    %2140 = vmatpush1.msra.mxu0 0.0
    %2141 = vmatprep.subr.mxu0 0.0
    %2142 = vmatpush1.msra.mxu0 0.0
    %2143 = vmatprep.subr.mxu0 0.0
    %2144 = vmatpush1.msra.mxu0 0.0
    %2145 = vmatprep.subr.mxu0 0.0
    %2146 = vmatpush1.msra.mxu0 0.0
    %2147 = vmatprep.subr.mxu0 0.0
    %2148 = vmatpush1.msra.mxu0 0.0
    %2149 = vmatprep.subr.mxu0 0.0
    %2150 = vmatpush1.msra.mxu0 0.0
    %2151 = vmatprep.subr.mxu0 0.0
    %2152 = vmatpush1.msra.mxu0 0.0
    %2153 = vmatprep.subr.mxu0 0.0
    %2154 = vmatpush1.msra.mxu0 0.0
    %2155 = vmatprep.subr.mxu0 0.0
    %2156 = vmatpush1.msra.mxu0 0.0
    %2157 = vmatprep.subr.mxu0 0.0
    %2158 = vmatpush1.msra.mxu0 0.0
    %2159 = vmatprep.subr.mxu0 0.0
    %2160 = vmatpush1.msra.mxu0 0.0
    %2161 = vmatprep.subr.mxu0 0.0
    %2162 = vmatpush1.msra.mxu0 0.0
    %2163 = vmatprep.subr.mxu0 0.0
    %2164 = vmatpush1.msra.mxu0 0.0
    %2165 = vmatprep.subr.mxu0 0.0
    %2166 = vmatpush1.msra.mxu0 0.0
    %2167 = vmatprep.mubr.f32.mxu0 0.0
    %2168 = vmatmul.mubr.f32.gmra.mrb[0].mxu0 %v2101
    %v2169 = vpop.f32.mrb[0].mxu0
    %v2170 = vadd.f32 0.0, %v2169
    %v2171 = vpop.f32.mrb[0].mxu0
    %2172 = vdwg.mxu0
    %v2174 = vsel %vm224, %v2020, 0
    %2176 = vmatprep.subr.mxu0 0.0
    %2177 = vmatpush1.msra.mxu0 %v31
    %2178 = vmatprep.subr.mxu0 0.0
    %2179 = vmatpush1.msra.mxu0 %v32
    %2180 = vmatprep.subr.mxu0 0.0
    %2181 = vmatpush1.msra.mxu0 %v33
    %2182 = vmatprep.subr.mxu0 0.0
    %2183 = vmatpush1.msra.mxu0 %v34
    %2184 = vmatprep.subr.mxu0 0.0
    %2185 = vmatpush1.msra.mxu0 0.0
    %2186 = vmatprep.subr.mxu0 0.0
    %2187 = vmatpush1.msra.mxu0 0.0
    %2188 = vmatprep.subr.mxu0 0.0
    %2189 = vmatpush1.msra.mxu0 0.0
    %2190 = vmatprep.subr.mxu0 0.0
    %2191 = vmatpush1.msra.mxu0 0.0
    %2192 = vmatprep.subr.mxu0 0.0
    %2193 = vmatpush1.msra.mxu0 0.0
    %2194 = vmatprep.subr.mxu0 0.0
    %2195 = vmatpush1.msra.mxu0 0.0
    %2196 = vmatprep.subr.mxu0 0.0
    %2197 = vmatpush1.msra.mxu0 0.0
    %2198 = vmatprep.subr.mxu0 0.0
    %2199 = vmatpush1.msra.mxu0 0.0
    %2200 = vmatprep.subr.mxu0 0.0
    %2201 = vmatpush1.msra.mxu0 0.0
    %2202 = vmatprep.subr.mxu0 0.0
    %2203 = vmatpush1.msra.mxu0 0.0
    %2204 = vmatprep.subr.mxu0 0.0
    %2205 = vmatpush1.msra.mxu0 0.0
    %2206 = vmatprep.subr.mxu0 0.0
    %2207 = vmatpush1.msra.mxu0 0.0
    %2208 = vmatprep.subr.mxu0 0.0
    %2209 = vmatpush1.msra.mxu0 0.0
    %2210 = vmatprep.subr.mxu0 0.0
    %2211 = vmatpush1.msra.mxu0 0.0
    %2212 = vmatprep.subr.mxu0 0.0
    %2213 = vmatpush1.msra.mxu0 0.0
    %2214 = vmatprep.subr.mxu0 0.0
    %2215 = vmatpush1.msra.mxu0 0.0
    %2216 = vmatprep.subr.mxu0 0.0
    %2217 = vmatpush1.msra.mxu0 0.0
    %2218 = vmatprep.subr.mxu0 0.0
    %2219 = vmatpush1.msra.mxu0 0.0
    %2220 = vmatprep.subr.mxu0 0.0
    %2221 = vmatpush1.msra.mxu0 0.0
    %2222 = vmatprep.subr.mxu0 0.0
    %2223 = vmatpush1.msra.mxu0 0.0
    %2224 = vmatprep.subr.mxu0 0.0
    %2225 = vmatpush1.msra.mxu0 0.0
    %2226 = vmatprep.subr.mxu0 0.0
    %2227 = vmatpush1.msra.mxu0 0.0
    %2228 = vmatprep.subr.mxu0 0.0
    %2229 = vmatpush1.msra.mxu0 0.0
    %2230 = vmatprep.subr.mxu0 0.0
    %2231 = vmatpush1.msra.mxu0 0.0
    %2232 = vmatprep.subr.mxu0 0.0
    %2233 = vmatpush1.msra.mxu0 0.0
    %2234 = vmatprep.subr.mxu0 0.0
    %2235 = vmatpush1.msra.mxu0 0.0
    %2236 = vmatprep.subr.mxu0 0.0
    %2237 = vmatpush1.msra.mxu0 0.0
    %2238 = vmatprep.subr.mxu0 0.0
    %2239 = vmatpush1.msra.mxu0 0.0
    %2240 = vmatprep.mubr.f32.mxu0 0.0
    %2241 = vmatmul.mubr.f32.gmra.mrb[0].mxu0 %v2174
    %v2242 = vpop.f32.mrb[0].mxu0
    %v2243 = vadd.f32 %v2170, %v2242
    %v2244 = vpop.f32.mrb[0].mxu0
    %2245 = vdwg.mxu0
    %v2246 = vlaneseq
    %v2247 = vshrl.u32 %v2246, 7
    %v2248 = vsub.s32 3, %v2247
    %v2249 = vrot.slane %v39, %v2248
    %v2250 = vadd.f32 %v2243, %v2249
    %vm2251 = vcmask 60416
    %2252 = vst.msk [vmem:[#allocation2] sm:$0xf] %vm2251, %v2250
    %s2253 = scalar_lea.vmem [#allocation2], 4
    %2254 = vst.msk [vmem:[%s2253] sm:$0xf] %vm2251, %v2250
    %s2255 = scalar_lea.vmem [#allocation2], 8
    %2256 = vst.msk [vmem:[%s2255] sm:$0xf] %vm2251, %v2250
    %s2257 = scalar_lea.vmem [#allocation2], 12
    %2258 = vst.msk [vmem:[%s2257] sm:$0xf] %vm2251, %v2250
    %s2259 = scalar_lea.vmem [#allocation2], 16
    %2260 = vst.msk [vmem:[%s2259] sm:$0xf] %vm2251, %v2250
    %s2261 = scalar_lea.vmem [#allocation2], 20
    %2262 = vst.msk [vmem:[%s2261] sm:$0xf] %vm2251, %v2250
    %s2263 = scalar_lea.vmem [#allocation2], 24
    %2264 = vst.msk [vmem:[%s2263] sm:$0xf] %vm2251, %v2250
    %s2265 = scalar_lea.vmem [#allocation2], 28
    %2266 = vst.msk [vmem:[%s2265] sm:$0xf] %vm2251, %v2250
    // Predicated region
    $region10: #{tpu_custom_call.1} parent=1 // pred_check
      _
    $region11: #{tpu_custom_call.1} parent=1 // pred_check_branch
      %2268 = sbr.rel (0) target = $region13
    $region12: #{tpu_custom_call.1} parent=1 // pred_region
      %s2270 = ssub.s32 512, 512
      %2271 = vsyncadd [#allocation3], %s2270
      %s2272 = sshll.u32 [#allocation2], 4
      %s2273 = int_to_ptr.vmem [resolvable:$true] %s2272
      %2278 = dma.vmem_to_hbm [thread:$0]  %s2273, 512, %s2, [#allocation3], 64, 64, 4
    $region13: #{tpu_custom_call.1} parent=1 // pred_fallthru
      _
    // Predicated region
    $region14: #{tpu_custom_call.1} parent=1 // pred_check
      _
    $region15: #{tpu_custom_call.1} parent=1 // pred_check_branch
      %2280 = sbr.rel (0) target = $region17
    $region16: #{tpu_custom_call.1} parent=1 // pred_region
      %2281 = dma.done [#allocation3], 512
    $region17: #{tpu_custom_call.1} parent=1 // pred_fallthru
      _
    %2282 = vsyncpa [#allocation3], 1

</llo_original>
